<compile_context>
chip_gen: v6e
topology: v6e:2x2x1
jax: 0.10.0
libtpu: 0.0.40
codegen_flags: <defaults>
</compile_context>

<pallas_src>
import functools

import jax
import jax.numpy as jnp
import numpy as np
from jax.experimental import pallas as pl
from jax.experimental.pallas import tpu as pltpu


# ----------------------------------------------------------------------------
# In-kernel helpers (pure jnp on VMEM-resident values)
# ----------------------------------------------------------------------------
def _cat_row_neighbors(x, imgs, rows_per_img):
    """[x[r-1] | x[r] | x[r+1]] lane-concatenated, per image.

    x: (imgs*rows_per_img, L).  Rows of different images never mix: the missing neighbour at
    the top/bottom of each image is a zero row (the conv's zero padding along H).
    Returns (imgs*rows_per_img, 3*L), same dtype as x.
    """
    n_rows, lanes = x.shape
    x3 = x.reshape(imgs, rows_per_img, lanes)
    zrow = jnp.zeros((imgs, 1, lanes), x.dtype)
    x_up = jnp.concatenate([zrow, x3[:, :rows_per_img - 1]], axis=1)     # x[r-1]
    x_dn = jnp.concatenate([x3[:, 1:], zrow], axis=1)                    # x[r+1]
    return jnp.concatenate([x_up, x3, x_dn], axis=2).reshape(n_rows, 3 * lanes)


def _maxpool3x3_s2_p1(y, imgs, ho, woc, cout):
    """max_pool2d(kernel_size=3, stride=2, padding=1), fused with the stem column layout.

    y: (imgs*2*ho, 2*woc) float32 stem-conv output whose lanes were pre-arranged (via the stem
    weight column order) into [even ow groups | odd ow groups], each woc = (W/2)*Cout wide.
    Returns (imgs*ho, woc) float32 in natural (ow, channel) lane order.
    """
    full = 2 * woc
    # rows: max over original rows {2*oh-1, 2*oh, 2*oh+1}  (-inf above the image)
    y3 = y.reshape(imgs * ho, 2, full)
    r_even = y3[:, 0].reshape(imgs, ho, full)                     # original rows 2*oh
    r_odd = y3[:, 1].reshape(imgs, ho, full)                      # original rows 2*oh + 1
    r_prev = jnp.concatenate(                                     # original rows 2*oh - 1
        [jnp.full((imgs, 1, full), -jnp.inf, jnp.float32), r_odd[:, :ho - 1]], axis=1)
    rmax = jnp.maximum(jnp.maximum(r_even, r_odd), r_prev)        # (imgs, ho, full)
    # cols: max over original column groups {2*ow-1, 2*ow, 2*ow+1}  (-inf left of the image)
    c_even = rmax[..., :woc]                                      # group 2*ow
    c_odd = rmax[..., woc:]                                       # group 2*ow + 1
    c_prev = jnp.concatenate(                                     # group 2*ow - 1
        [jnp.full((imgs, ho, cout), -jnp.inf, jnp.float32), c_odd[..., :woc - cout]], axis=2)
    p = jnp.maximum(jnp.maximum(c_even, c_odd), c_prev)           # (imgs, ho, woc)
    return p.reshape(imgs * ho, woc)


def _conv_sequence_kernel(x_ref, w0_ref, b0_ref, wr_ref, br_ref, o_ref, *,
                          bb, height, width, cout):
    """Fused ConvSequence for a block of bb images.  Everything stays in VMEM / vregs."""
    ho, wo = height // 2, width // 2
    woc = wo * cout

    # ---- stem conv (no input relu): single K = 3*W*Cin matmul; weight columns pre-arranged
    # into [even ow | odd ow] groups for the fused max-pool. -----------------------------------
    x = x_ref[...]                                                # (bb*H, W*Cin) bf16
    xcat = _cat_row_neighbors(x, bb, height)                      # (bb*H, 3*W*Cin) bf16
    y = jnp.dot(xcat, w0_ref[...],
                preferred_element_type=jnp.float32) + b0_ref[...]   # (bb*H, 2*woc) f32

    # ---- max_pool2d(kernel_size=3, stride=2, padding=1) --------------------------------------
    p = _maxpool3x3_s2_p1(y, bb, ho, woc, cout)                   # (bb*ho, woc) f32

    # ---- res_block0 / res_block1:  x + conv1(relu(conv0(relu(x)))) ---------------------------
    for blk in range(2):
        j0, j1 = 2 * blk, 2 * blk + 1
        t = _cat_row_neighbors(jnp.maximum(p, 0.0).astype(jnp.bfloat16), bb, ho)
        h = jnp.dot(t, wr_ref[j0], preferred_element_type=jnp.float32) + br_ref[j0]
        t = _cat_row_neighbors(jnp.maximum(h, 0.0).astype(jnp.bfloat16), bb, ho)
        p = jnp.dot(t, wr_ref[j1], preferred_element_type=jnp.float32) + br_ref[j1] + p

    # ---- lane-dense store: pair adjacent images along lanes (last dim 2*woc = 128) -----------
    p3 = p.reshape(bb // 2, 2 * ho, woc)
    o_ref[...] = jnp.concatenate([p3[:, :ho], p3[:, ho:]], axis=2).astype(o_ref.dtype)


# ----------------------------------------------------------------------------
# Wrapper-side weight expansion (small; cacheable per parameter set)
# ----------------------------------------------------------------------------
def _folded_band_weight(w9, width):
    """(9, Cin, Cout) 3x3 weights -> (3*width*Cin, width*Cout) float32 such that, in the
    lane-packed (rows, width*C) layout,
        y[r] = [x[r-1] | x[r] | x[r+1]] @ W + bias
    is exactly the 3x3 'same' (zero padded) convolution."""
    _, cin, cout = w9.shape
    w33 = w9.reshape(3, 3, cin, cout).astype(jnp.float32)
    blocks = []
    for dy in range(3):
        acc = jnp.zeros((width, cin, width, cout), jnp.float32)
        for dx in range(3):
            band = jnp.eye(width, width, k=1 - dx, dtype=jnp.float32)
            acc = acc + band[:, None, :, None] * w33[dy, dx][None, :, None, :]
        blocks.append(acc.reshape(width * cin, width * cout))
    return jnp.concatenate(blocks, axis=0)                        # (3*W*Cin, W*Cout)


def _stem_weights(w9, b, width, cout):
    """Stem conv weight/bias with output columns permuted into [even ow | odd ow] groups
    (the layout the fused max-pool consumes).  Only two column groups are emitted -- the
    2*ow-1 group is rebuilt in-kernel with a lane shift."""
    wfold = _folded_band_weight(w9, width)                        # (3*W*Cin, W*Cout)
    brow = jnp.tile(b.astype(jnp.float32), width)                 # (W*Cout,)
    col = np.arange(width * cout).reshape(width, cout)
    sel = np.concatenate([col[0::2].reshape(-1), col[1::2].reshape(-1)])
    return wfold[:, sel].astype(jnp.bfloat16), brow[sel].reshape(1, width * cout)


def _res_weights(params, wo):
    names = (("rb0_w0", "rb0_b0"), ("rb0_w1", "rb0_b1"),
             ("rb1_w0", "rb1_b0"), ("rb1_w1", "rb1_b1"))
    wr = jnp.stack([_folded_band_weight(params[w], wo) for w, _ in names])
    br = jnp.stack([jnp.tile(params[b].astype(jnp.float32), wo) for _, b in names])
    return wr.astype(jnp.bfloat16), br[:, None, :]                # (4,3*woc,woc), (4,1,woc)


# ----------------------------------------------------------------------------
# ConvSequence module (parameters + forward)
# ----------------------------------------------------------------------------
def _init_conv_params(key, cin, cout):
    kw, kb = jax.random.split(key)
    bound = 1.0 / jnp.sqrt(9.0 * cin)
    w = jax.random.uniform(kw, (3, 3, cin, cout), jnp.float32, -bound, bound)
    b = jax.random.uniform(kb, (cout,), jnp.float32, -bound, bound)
    return w.reshape(9, cin, cout), b


def init_conv_sequence_params(key, input_shape, out_channels):
    cin = input_shape[0]
    keys = jax.random.split(key, 5)
    p = {}
    p["conv_w"], p["conv_b"] = _init_conv_params(keys[0], cin, out_channels)
    p["rb0_w0"], p["rb0_b0"] = _init_conv_params(keys[1], out_channels, out_channels)
    p["rb0_w1"], p["rb0_b1"] = _init_conv_params(keys[2], out_channels, out_channels)
    p["rb1_w0"], p["rb1_b0"] = _init_conv_params(keys[3], out_channels, out_channels)
    p["rb1_w1"], p["rb1_b1"] = _init_conv_params(keys[4], out_channels, out_channels)
    return p


def _pick_block_batch(n, target=8):
    """Even BB dividing n, <= target, preferring >= 2 grid steps (v7x dual TensorCore)."""
    cands = [d for d in range(2, min(n, target) + 1, 2) if n % d == 0]
    if not cands:
        cands = [2]
    two_step = [d for d in cands if n // d >= 2]
    return max(two_step) if two_step else min(cands)


def conv_sequence_forward(params, x_nchw, input_shape, out_channels, block_batch=8):
    """Forward pass of ConvSequence.  Input/output are NCHW float32 like the PyTorch module."""
    n = x_nchw.shape[0]
    cin, height, width = input_shape
    cout = out_channels
    # TODO(synk): odd H/W (the 21x21 stage of a full IMPALA stack) needs one extra -inf
    # row/column group in the fused max-pool; only even spatial sizes are handled here.
    assert height % 2 == 0 and width % 2 == 0, (height, width)
    # TODO(synk): odd batch sizes need a non-paired (64-lane) output store path.
    assert n % 2 == 0, n
    ho, wo = height // 2, width // 2
    woc = wo * cout
    bb = _pick_block_batch(n, block_batch)

    # NCHW -> lane-packed, batch-flattened (N*H, W*Cin) bf16.
    x = jnp.transpose(x_nchw, (0, 2, 3, 1)).reshape(n * height, width * cin)
    x = x.astype(jnp.bfloat16)

    # Pre-expanded banded bf16 matmul weights.
    # TODO(synk): the banded weights are O(W^2*Cin*Cout); for the real 84x84 IMPALA stage tile
    # the width into halo'd chunks and re-derive VMEM sizing against v7x's 64 MiB VMEM.
    w0, b0 = _stem_weights(params["conv_w"], params["conv_b"], width, cout)
    wr, br = _res_weights(params, wo)

    kernel = functools.partial(_conv_sequence_kernel, bb=bb, height=height,
                               width=width, cout=cout)

    out_packed = pl.pallas_call(
        kernel,
        out_shape=jax.ShapeDtypeStruct((n // 2, ho, 2 * woc), jnp.float32),
        grid=(n // bb,),
        in_specs=[
            pl.BlockSpec((bb * height, width * cin), lambda i: (i, 0)),     # image block
            pl.BlockSpec((3 * width * cin, 2 * woc), lambda i: (0, 0)),     # stem weight
            pl.BlockSpec((1, 2 * woc), lambda i: (0, 0)),                   # stem bias
            pl.BlockSpec((4, 3 * woc, woc), lambda i: (0, 0, 0)),           # res-block weights
            pl.BlockSpec((4, 1, woc), lambda i: (0, 0, 0)),                 # res-block biases
        ],
        out_specs=pl.BlockSpec((bb // 2, ho, 2 * woc), lambda i: (i, 0, 0)),
        compiler_params=pltpu.CompilerParams(
            dimension_semantics=("parallel",),
            vmem_limit_bytes=32 * 1024 * 1024),
    )(x, w0, b0, wr, br)

    # (n//2, ho, [image pair k | ow | c]) -> NCHW.  A chained ConvSequence stage could consume
    # the packed layout directly and skip this relayout.
    out = out_packed.reshape(n // 2, ho, 2, wo, cout)
    out = out.transpose(0, 2, 4, 1, 3).reshape(n, cout, ho, wo)
    assert out.shape[1:] == (cout, ho, wo), out.shape
    return out


# ----------------------------------------------------------------------------
# Pure-JAX references (correctness checking only)
# ----------------------------------------------------------------------------
def _ref_conv(x_nhwc, w9, b, relu_input, bf16_inputs):
    cin, cout = w9.shape[1], w9.shape[2]
    if relu_input:
        x_nhwc = jnp.maximum(x_nhwc, 0.0)
    w = w9.reshape(3, 3, cin, cout)
    if bf16_inputs:
        x_nhwc = x_nhwc.astype(jnp.bfloat16)
        w = w.astype(jnp.bfloat16)
    y = jax.lax.conv_general_dilated(
        x_nhwc, w, window_strides=(1, 1), padding="SAME",
        dimension_numbers=("NHWC", "HWIO", "NHWC"),
        preferred_element_type=jnp.float32)
    return y + b.astype(jnp.float32)


def _ref_forward(params, x_nchw, bf16_inputs):
    x = jnp.transpose(x_nchw, (0, 2, 3, 1)).astype(jnp.float32)
    x = _ref_conv(x, params["conv_w"], params["conv_b"], False, bf16_inputs)
    x = jax.lax.reduce_window(
        x, -jnp.inf, jax.lax.max, (1, 3, 3, 1), (1, 2, 2, 1),
        padding=((0, 0), (1, 1), (1, 1), (0, 0)))
    h = _ref_conv(x, params["rb0_w0"], params["rb0_b0"], True, bf16_inputs)
    x = _ref_conv(h, params["rb0_w1"], params["rb0_b1"], True, bf16_inputs) + x
    h = _ref_conv(x, params["rb1_w0"], params["rb1_b0"], True, bf16_inputs)
    x = _ref_conv(h, params["rb1_w1"], params["rb1_b1"], True, bf16_inputs) + x
    return jnp.transpose(x, (0, 3, 1, 2))


# ----------------------------------------------------------------------------
# Main
# ----------------------------------------------------------------------------
if __name__ == "__main__":
    key = jax.random.PRNGKey(0)
    k_params, k_x = jax.random.split(key)

    input_shape = (4, 16, 16)   # (C, H, W) as in the PyTorch module
    out_channels = 8
    batch = 8                   # batch-blocked as BB=4 images/step -> grid=(2,)

    params = init_conv_sequence_params(k_params, input_shape, out_channels)
    x = jax.random.normal(k_x, (batch,) + input_shape, dtype=jnp.float32)

    out = jax.block_until_ready(
        conv_sequence_forward(params, x, input_shape, out_channels))

    # Tight check vs. a reference whose matmul inputs are also rounded to bf16 (validates the
    # padding / banded-weight / pooling / residual structure exactly).
    ref16 = jax.block_until_ready(_ref_forward(params, x, bf16_inputs=True))
    # Loose check vs. the pure float32 reference (bf16 MXU inputs are the only delta).
    ref32 = jax.block_until_ready(_ref_forward(params, x, bf16_inputs=False))

    assert out.shape == ref32.shape == (batch, out_channels, 8, 8), out.shape
    err16 = float(jnp.max(jnp.abs(out - ref16)))
    err32 = float(jnp.max(jnp.abs(out - ref32)))
    assert jnp.allclose(out, ref16, rtol=1e-3, atol=1e-3), err16
    assert jnp.allclose(out, ref32, rtol=2e-2, atol=2e-2), err32

    print("KERNEL_OK")
</pallas_src>

<mosaic_0001>
module attributes {stable_mosaic.version = 11 : i64} {
  func.func @_conv_sequence_kernel(%arg0: i32, %arg1: memref<64x64xbf16, #tpu.memory_space<vmem>>, %arg2: memref<192x128xbf16, #tpu.memory_space<vmem>>, %arg3: memref<1x128xf32, #tpu.memory_space<vmem>>, %arg4: memref<4x192x64xbf16, #tpu.memory_space<vmem>>, %arg5: memref<4x1x64xf32, #tpu.memory_space<vmem>>, %arg6: memref<2x8x128xf32, #tpu.memory_space<vmem>>) attributes {dimension_semantics = [#tpu.dimension_semantics<parallel>], iteration_bounds = array<i64: 2>, scalar_prefetch = 0 : i64, scratch_operands = 0 : i64, tpu.core_type = #tpu.core_type<tc>, window_params = [{transform_indices = @transform_0, window_bounds = array<i64: 64, 64>}, {pipeline_mode = #tpu.pipeline_mode<synchronous>, transform_indices = @transform_1, window_bounds = array<i64: 192, 128>}, {pipeline_mode = #tpu.pipeline_mode<synchronous>, transform_indices = @transform_2, window_bounds = array<i64: 1, 128>}, {pipeline_mode = #tpu.pipeline_mode<synchronous>, transform_indices = @transform_3, window_bounds = array<i64: 4, 192, 64>}, {pipeline_mode = #tpu.pipeline_mode<synchronous>, transform_indices = @transform_4, window_bounds = array<i64: 4, 1, 64>}, {transform_indices = @transform_5, window_bounds = array<i64: 2, 8, 128>}]} {
    %c0 = arith.constant 0 : index
    %c0_0 = arith.constant 0 : index
    %0 = vector.load %arg1[%c0, %c0_0] : memref<64x64xbf16, #tpu.memory_space<vmem>>, vector<64x64xbf16>
    %1 = vector.shape_cast %0 : vector<64x64xbf16> to vector<4x16x64xbf16>
    %cst = arith.constant 0.000000e+00 : bf16
    %2 = vector.broadcast %cst : bf16 to vector<4x1x64xbf16>
    %3 = vector.extract_strided_slice %1 {offsets = [0, 0, 0], sizes = [4, 15, 64], strides = [1, 1, 1]} : vector<4x16x64xbf16> to vector<4x15x64xbf16>
    %4 = tpu.concatenate %2, %3 in 1 : vector<4x1x64xbf16>, vector<4x15x64xbf16> -> vector<4x16x64xbf16>
    %5 = vector.extract_strided_slice %1 {offsets = [0, 1, 0], sizes = [4, 15, 64], strides = [1, 1, 1]} : vector<4x16x64xbf16> to vector<4x15x64xbf16>
    %6 = tpu.concatenate %5, %2 in 1 : vector<4x15x64xbf16>, vector<4x1x64xbf16> -> vector<4x16x64xbf16>
    %7 = tpu.concatenate %4, %1, %6 in 2 : vector<4x16x64xbf16>, vector<4x16x64xbf16>, vector<4x16x64xbf16> -> vector<4x16x192xbf16>
    %8 = vector.shape_cast %7 : vector<4x16x192xbf16> to vector<64x192xbf16>
    %c0_1 = arith.constant 0 : index
    %c0_2 = arith.constant 0 : index
    %9 = vector.load %arg2[%c0_1, %c0_2] : memref<192x128xbf16, #tpu.memory_space<vmem>>, vector<192x128xbf16>
    %cst_3 = arith.constant dense<0.000000e+00> : vector<64x128xf32>
    %10 = tpu.matmul %8, %9, %cst_3 {dimension_numbers = #tpu.dot_dimension_numbers<[1], [0], [0], [1], [0, 0, 1, 1], [], []>} : vector<64x192xbf16>, vector<192x128xbf16>, vector<64x128xf32> -> vector<64x128xf32>
    %c0_4 = arith.constant 0 : index
    %c0_5 = arith.constant 0 : index
    %11 = vector.load %arg3[%c0_4, %c0_5] : memref<1x128xf32, #tpu.memory_space<vmem>>, vector<1x128xf32>
    %12 = vector.broadcast %11 : vector<1x128xf32> to vector<64x128xf32>
    %13 = arith.addf %10, %12 : vector<64x128xf32>
    %14 = vector.shape_cast %13 : vector<64x128xf32> to vector<32x2x128xf32>
    %15 = vector.extract_strided_slice %14 {offsets = [0, 0, 0], sizes = [32, 1, 128], strides = [1, 1, 1]} : vector<32x2x128xf32> to vector<32x1x128xf32>
    %16 = vector.shape_cast %15 : vector<32x1x128xf32> to vector<32x128xf32>
    %17 = vector.shape_cast %16 : vector<32x128xf32> to vector<4x8x128xf32>
    %18 = vector.extract_strided_slice %14 {offsets = [0, 1, 0], sizes = [32, 1, 128], strides = [1, 1, 1]} : vector<32x2x128xf32> to vector<32x1x128xf32>
    %19 = vector.shape_cast %18 : vector<32x1x128xf32> to vector<32x128xf32>
    %20 = vector.shape_cast %19 : vector<32x128xf32> to vector<4x8x128xf32>
    %cst_6 = arith.constant 0xFF800000 : f32
    %21 = vector.broadcast %cst_6 : f32 to vector<4x1x128xf32>
    %22 = vector.extract_strided_slice %20 {offsets = [0, 0, 0], sizes = [4, 7, 128], strides = [1, 1, 1]} : vector<4x8x128xf32> to vector<4x7x128xf32>
    %23 = tpu.concatenate %21, %22 in 1 : vector<4x1x128xf32>, vector<4x7x128xf32> -> vector<4x8x128xf32>
    %24 = arith.maximumf %17, %20 : vector<4x8x128xf32>
    %25 = arith.maximumf %24, %23 : vector<4x8x128xf32>
    %26 = vector.extract_strided_slice %25 {offsets = [0, 0, 0], sizes = [4, 8, 64], strides = [1, 1, 1]} : vector<4x8x128xf32> to vector<4x8x64xf32>
    %27 = vector.extract_strided_slice %25 {offsets = [0, 0, 64], sizes = [4, 8, 64], strides = [1, 1, 1]} : vector<4x8x128xf32> to vector<4x8x64xf32>
    %cst_7 = arith.constant 0xFF800000 : f32
    %28 = vector.broadcast %cst_7 : f32 to vector<4x8x8xf32>
    %29 = vector.extract_strided_slice %27 {offsets = [0, 0, 0], sizes = [4, 8, 56], strides = [1, 1, 1]} : vector<4x8x64xf32> to vector<4x8x56xf32>
    %30 = tpu.concatenate %28, %29 in 2 : vector<4x8x8xf32>, vector<4x8x56xf32> -> vector<4x8x64xf32>
    %31 = arith.maximumf %26, %27 : vector<4x8x64xf32>
    %32 = arith.maximumf %31, %30 : vector<4x8x64xf32>
    %33 = vector.shape_cast %32 : vector<4x8x64xf32> to vector<32x64xf32>
    %cst_8 = arith.constant 0.000000e+00 : f32
    %34 = vector.broadcast %cst_8 : f32 to vector<32x64xf32>
    %35 = arith.maximumf %33, %34 : vector<32x64xf32>
    %36 = arith.truncf %35 : vector<32x64xf32> to vector<32x64xbf16>
    %37 = vector.shape_cast %36 : vector<32x64xbf16> to vector<4x8x64xbf16>
    %cst_9 = arith.constant 0.000000e+00 : bf16
    %38 = vector.broadcast %cst_9 : bf16 to vector<4x1x64xbf16>
    %39 = vector.extract_strided_slice %37 {offsets = [0, 0, 0], sizes = [4, 7, 64], strides = [1, 1, 1]} : vector<4x8x64xbf16> to vector<4x7x64xbf16>
    %40 = tpu.concatenate %38, %39 in 1 : vector<4x1x64xbf16>, vector<4x7x64xbf16> -> vector<4x8x64xbf16>
    %41 = vector.extract_strided_slice %37 {offsets = [0, 1, 0], sizes = [4, 7, 64], strides = [1, 1, 1]} : vector<4x8x64xbf16> to vector<4x7x64xbf16>
    %42 = tpu.concatenate %41, %38 in 1 : vector<4x7x64xbf16>, vector<4x1x64xbf16> -> vector<4x8x64xbf16>
    %43 = tpu.concatenate %40, %37, %42 in 2 : vector<4x8x64xbf16>, vector<4x8x64xbf16>, vector<4x8x64xbf16> -> vector<4x8x192xbf16>
    %44 = vector.shape_cast %43 : vector<4x8x192xbf16> to vector<32x192xbf16>
    %c0_10 = arith.constant 0 : index
    %c0_11 = arith.constant 0 : index
    %c0_12 = arith.constant 0 : index
    %45 = vector.load %arg4[%c0_10, %c0_11, %c0_12] : memref<4x192x64xbf16, #tpu.memory_space<vmem>>, vector<1x192x64xbf16>
    %46 = vector.shape_cast %45 : vector<1x192x64xbf16> to vector<192x64xbf16>
    %cst_13 = arith.constant dense<0.000000e+00> : vector<32x64xf32>
    %47 = tpu.matmul %44, %46, %cst_13 {dimension_numbers = #tpu.dot_dimension_numbers<[1], [0], [0], [1], [0, 0, 1, 1], [], []>} : vector<32x192xbf16>, vector<192x64xbf16>, vector<32x64xf32> -> vector<32x64xf32>
    %c0_14 = arith.constant 0 : index
    %c0_15 = arith.constant 0 : index
    %c0_16 = arith.constant 0 : index
    %48 = vector.load %arg5[%c0_14, %c0_15, %c0_16] : memref<4x1x64xf32, #tpu.memory_space<vmem>>, vector<1x1x64xf32>
    %49 = vector.shape_cast %48 : vector<1x1x64xf32> to vector<1x64xf32>
    %50 = vector.broadcast %49 : vector<1x64xf32> to vector<32x64xf32>
    %51 = arith.addf %47, %50 : vector<32x64xf32>
    %cst_17 = arith.constant 0.000000e+00 : f32
    %52 = vector.broadcast %cst_17 : f32 to vector<32x64xf32>
    %53 = arith.maximumf %51, %52 : vector<32x64xf32>
    %54 = arith.truncf %53 : vector<32x64xf32> to vector<32x64xbf16>
    %55 = vector.shape_cast %54 : vector<32x64xbf16> to vector<4x8x64xbf16>
    %cst_18 = arith.constant 0.000000e+00 : bf16
    %56 = vector.broadcast %cst_18 : bf16 to vector<4x1x64xbf16>
    %57 = vector.extract_strided_slice %55 {offsets = [0, 0, 0], sizes = [4, 7, 64], strides = [1, 1, 1]} : vector<4x8x64xbf16> to vector<4x7x64xbf16>
    %58 = tpu.concatenate %56, %57 in 1 : vector<4x1x64xbf16>, vector<4x7x64xbf16> -> vector<4x8x64xbf16>
    %59 = vector.extract_strided_slice %55 {offsets = [0, 1, 0], sizes = [4, 7, 64], strides = [1, 1, 1]} : vector<4x8x64xbf16> to vector<4x7x64xbf16>
    %60 = tpu.concatenate %59, %56 in 1 : vector<4x7x64xbf16>, vector<4x1x64xbf16> -> vector<4x8x64xbf16>
    %61 = tpu.concatenate %58, %55, %60 in 2 : vector<4x8x64xbf16>, vector<4x8x64xbf16>, vector<4x8x64xbf16> -> vector<4x8x192xbf16>
    %62 = vector.shape_cast %61 : vector<4x8x192xbf16> to vector<32x192xbf16>
    %c1 = arith.constant 1 : index
    %c0_19 = arith.constant 0 : index
    %c0_20 = arith.constant 0 : index
    %63 = vector.load %arg4[%c1, %c0_19, %c0_20] : memref<4x192x64xbf16, #tpu.memory_space<vmem>>, vector<1x192x64xbf16>
    %64 = vector.shape_cast %63 : vector<1x192x64xbf16> to vector<192x64xbf16>
    %cst_21 = arith.constant dense<0.000000e+00> : vector<32x64xf32>
    %65 = tpu.matmul %62, %64, %cst_21 {dimension_numbers = #tpu.dot_dimension_numbers<[1], [0], [0], [1], [0, 0, 1, 1], [], []>} : vector<32x192xbf16>, vector<192x64xbf16>, vector<32x64xf32> -> vector<32x64xf32>
    %c1_22 = arith.constant 1 : index
    %c0_23 = arith.constant 0 : index
    %c0_24 = arith.constant 0 : index
    %66 = vector.load %arg5[%c1_22, %c0_23, %c0_24] : memref<4x1x64xf32, #tpu.memory_space<vmem>>, vector<1x1x64xf32>
    %67 = vector.shape_cast %66 : vector<1x1x64xf32> to vector<1x64xf32>
    %68 = vector.broadcast %67 : vector<1x64xf32> to vector<32x64xf32>
    %69 = arith.addf %65, %68 : vector<32x64xf32>
    %70 = arith.addf %69, %33 : vector<32x64xf32>
    %cst_25 = arith.constant 0.000000e+00 : f32
    %71 = vector.broadcast %cst_25 : f32 to vector<32x64xf32>
    %72 = arith.maximumf %70, %71 : vector<32x64xf32>
    %73 = arith.truncf %72 : vector<32x64xf32> to vector<32x64xbf16>
    %74 = vector.shape_cast %73 : vector<32x64xbf16> to vector<4x8x64xbf16>
    %cst_26 = arith.constant 0.000000e+00 : bf16
    %75 = vector.broadcast %cst_26 : bf16 to vector<4x1x64xbf16>
    %76 = vector.extract_strided_slice %74 {offsets = [0, 0, 0], sizes = [4, 7, 64], strides = [1, 1, 1]} : vector<4x8x64xbf16> to vector<4x7x64xbf16>
    %77 = tpu.concatenate %75, %76 in 1 : vector<4x1x64xbf16>, vector<4x7x64xbf16> -> vector<4x8x64xbf16>
    %78 = vector.extract_strided_slice %74 {offsets = [0, 1, 0], sizes = [4, 7, 64], strides = [1, 1, 1]} : vector<4x8x64xbf16> to vector<4x7x64xbf16>
    %79 = tpu.concatenate %78, %75 in 1 : vector<4x7x64xbf16>, vector<4x1x64xbf16> -> vector<4x8x64xbf16>
    %80 = tpu.concatenate %77, %74, %79 in 2 : vector<4x8x64xbf16>, vector<4x8x64xbf16>, vector<4x8x64xbf16> -> vector<4x8x192xbf16>
    %81 = vector.shape_cast %80 : vector<4x8x192xbf16> to vector<32x192xbf16>
    %c2 = arith.constant 2 : index
    %c0_27 = arith.constant 0 : index
    %c0_28 = arith.constant 0 : index
    %82 = vector.load %arg4[%c2, %c0_27, %c0_28] : memref<4x192x64xbf16, #tpu.memory_space<vmem>>, vector<1x192x64xbf16>
    %83 = vector.shape_cast %82 : vector<1x192x64xbf16> to vector<192x64xbf16>
    %cst_29 = arith.constant dense<0.000000e+00> : vector<32x64xf32>
    %84 = tpu.matmul %81, %83, %cst_29 {dimension_numbers = #tpu.dot_dimension_numbers<[1], [0], [0], [1], [0, 0, 1, 1], [], []>} : vector<32x192xbf16>, vector<192x64xbf16>, vector<32x64xf32> -> vector<32x64xf32>
    %c2_30 = arith.constant 2 : index
    %c0_31 = arith.constant 0 : index
    %c0_32 = arith.constant 0 : index
    %85 = vector.load %arg5[%c2_30, %c0_31, %c0_32] : memref<4x1x64xf32, #tpu.memory_space<vmem>>, vector<1x1x64xf32>
    %86 = vector.shape_cast %85 : vector<1x1x64xf32> to vector<1x64xf32>
    %87 = vector.broadcast %86 : vector<1x64xf32> to vector<32x64xf32>
    %88 = arith.addf %84, %87 : vector<32x64xf32>
    %cst_33 = arith.constant 0.000000e+00 : f32
    %89 = vector.broadcast %cst_33 : f32 to vector<32x64xf32>
    %90 = arith.maximumf %88, %89 : vector<32x64xf32>
    %91 = arith.truncf %90 : vector<32x64xf32> to vector<32x64xbf16>
    %92 = vector.shape_cast %91 : vector<32x64xbf16> to vector<4x8x64xbf16>
    %cst_34 = arith.constant 0.000000e+00 : bf16
    %93 = vector.broadcast %cst_34 : bf16 to vector<4x1x64xbf16>
    %94 = vector.extract_strided_slice %92 {offsets = [0, 0, 0], sizes = [4, 7, 64], strides = [1, 1, 1]} : vector<4x8x64xbf16> to vector<4x7x64xbf16>
    %95 = tpu.concatenate %93, %94 in 1 : vector<4x1x64xbf16>, vector<4x7x64xbf16> -> vector<4x8x64xbf16>
    %96 = vector.extract_strided_slice %92 {offsets = [0, 1, 0], sizes = [4, 7, 64], strides = [1, 1, 1]} : vector<4x8x64xbf16> to vector<4x7x64xbf16>
    %97 = tpu.concatenate %96, %93 in 1 : vector<4x7x64xbf16>, vector<4x1x64xbf16> -> vector<4x8x64xbf16>
    %98 = tpu.concatenate %95, %92, %97 in 2 : vector<4x8x64xbf16>, vector<4x8x64xbf16>, vector<4x8x64xbf16> -> vector<4x8x192xbf16>
    %99 = vector.shape_cast %98 : vector<4x8x192xbf16> to vector<32x192xbf16>
    %c3 = arith.constant 3 : index
    %c0_35 = arith.constant 0 : index
    %c0_36 = arith.constant 0 : index
    %100 = vector.load %arg4[%c3, %c0_35, %c0_36] : memref<4x192x64xbf16, #tpu.memory_space<vmem>>, vector<1x192x64xbf16>
    %101 = vector.shape_cast %100 : vector<1x192x64xbf16> to vector<192x64xbf16>
    %cst_37 = arith.constant dense<0.000000e+00> : vector<32x64xf32>
    %102 = tpu.matmul %99, %101, %cst_37 {dimension_numbers = #tpu.dot_dimension_numbers<[1], [0], [0], [1], [0, 0, 1, 1], [], []>} : vector<32x192xbf16>, vector<192x64xbf16>, vector<32x64xf32> -> vector<32x64xf32>
    %c3_38 = arith.constant 3 : index
    %c0_39 = arith.constant 0 : index
    %c0_40 = arith.constant 0 : index
    %103 = vector.load %arg5[%c3_38, %c0_39, %c0_40] : memref<4x1x64xf32, #tpu.memory_space<vmem>>, vector<1x1x64xf32>
    %104 = vector.shape_cast %103 : vector<1x1x64xf32> to vector<1x64xf32>
    %105 = vector.broadcast %104 : vector<1x64xf32> to vector<32x64xf32>
    %106 = arith.addf %102, %105 : vector<32x64xf32>
    %107 = arith.addf %106, %70 : vector<32x64xf32>
    %108 = vector.shape_cast %107 : vector<32x64xf32> to vector<2x16x64xf32>
    %109 = vector.extract_strided_slice %108 {offsets = [0, 0, 0], sizes = [2, 8, 64], strides = [1, 1, 1]} : vector<2x16x64xf32> to vector<2x8x64xf32>
    %110 = vector.extract_strided_slice %108 {offsets = [0, 8, 0], sizes = [2, 8, 64], strides = [1, 1, 1]} : vector<2x16x64xf32> to vector<2x8x64xf32>
    %111 = tpu.concatenate %109, %110 in 2 : vector<2x8x64xf32>, vector<2x8x64xf32> -> vector<2x8x128xf32>
    %c0_41 = arith.constant 0 : index
    %c0_42 = arith.constant 0 : index
    %c0_43 = arith.constant 0 : index
    %112 = vector.load %arg6[%c0_41, %c0_42, %c0_43] : memref<2x8x128xf32, #tpu.memory_space<vmem>>, vector<2x8x128xf32>
    tpu.vector_store %arg6[%c0_41, %c0_42, %c0_43], %111 {strides = array<i32>} : memref<2x8x128xf32, #tpu.memory_space<vmem>>, vector<2x8x128xf32>,
    return
  }
  func.func @transform_0(%arg0: i32) -> (i32, i32) {
    %c0_i32 = arith.constant 0 : i32
    %c0_i32_0 = arith.constant 0 : i32
    return %arg0, %c0_i32 : i32, i32
  }
  func.func @transform_1(%arg0: i32) -> (i32, i32) {
    %c0_i32 = arith.constant 0 : i32
    %c0_i32_0 = arith.constant 0 : i32
    %c0_i32_1 = arith.constant 0 : i32
    return %c0_i32, %c0_i32_0 : i32, i32
  }
  func.func @transform_2(%arg0: i32) -> (i32, i32) {
    %c0_i32 = arith.constant 0 : i32
    %c0_i32_0 = arith.constant 0 : i32
    %c0_i32_1 = arith.constant 0 : i32
    return %c0_i32, %c0_i32_0 : i32, i32
  }
  func.func @transform_3(%arg0: i32) -> (i32, i32, i32) {
    %c0_i32 = arith.constant 0 : i32
    %c0_i32_0 = arith.constant 0 : i32
    %c0_i32_1 = arith.constant 0 : i32
    %c0_i32_2 = arith.constant 0 : i32
    return %c0_i32, %c0_i32_0, %c0_i32_1 : i32, i32, i32
  }
  func.func @transform_4(%arg0: i32) -> (i32, i32, i32) {
    %c0_i32 = arith.constant 0 : i32
    %c0_i32_0 = arith.constant 0 : i32
    %c0_i32_1 = arith.constant 0 : i32
    %c0_i32_2 = arith.constant 0 : i32
    return %c0_i32, %c0_i32_0, %c0_i32_1 : i32, i32, i32
  }
  func.func @transform_5(%arg0: i32) -> (i32, i32, i32) {
    %c0_i32 = arith.constant 0 : i32
    %c0_i32_0 = arith.constant 0 : i32
    %c0_i32_1 = arith.constant 0 : i32
    return %arg0, %c0_i32, %c0_i32_0 : i32, i32, i32
  }
}

</mosaic_0001>

<llo_original>
// kernel: tpu_custom_call.1
$region0: #{tpu_custom_call.1}
  #allocation0 [shape = 'u32[]', space=smem, size = 0x4, offset = 0x4, fixed_abs, tag = 'smem constant byte address 0x4 - core index']
  #allocation1 [shape = 'u32[144,128]{1,0:T(1,128)}', space=vmem, size = 0x12000, scoped, tag = 'internal scratch']
  %s0 = inlined_call_operand.vmem [shape: bf16[128,64], index: 0, kind: input, shape index: {}]
  %s1 = inlined_call_operand.vmem [shape: bf16[192,128], index: 1, kind: input, shape index: {}]
  %s2 = inlined_call_operand.vmem [shape: f32[1,128], index: 2, kind: input, shape index: {}]
  %s3 = inlined_call_operand.vmem [shape: bf16[4,192,64], index: 3, kind: input, shape index: {}]
  %s4 = inlined_call_operand.vmem [shape: f32[4,1,64], index: 4, kind: input, shape index: {}]
  %s5 = inlined_call_operand.hbm [shape: f32[4,8,128], index: 5, kind: output, shape index: {}]
  %s6 = sld [smem:[#allocation0]]
  $region53: #{tpu_custom_call.1} parent=0
    _
  %s8 = ssub.s32 1, %s6
  %s9 = scalar_select 0, %s8, %s6
  $region1: #{tpu_custom_call.1} parent=0
    #allocation2 [shape = 'u8[16384]{0}', space=vmem, size = 0x4000, scoped, tag = 'output window, operand 0']
    #allocation3 [shape = 's32[2]{0}', space=sflag, size = 0x8, scoped, tag = 'scoped memory for tpu_custom_call.1']
    %10 = vsyncpa [#allocation3], 0
    %s11 = scalar_lea.sflag [#allocation3], 1
    %12 = vsyncpa %s11, 0
    loop: start=0, step=1, limit=4
    $region2: #{tpu_custom_call.1} parent=1 // loop_pre_header
      _
    $region3: #{tpu_custom_call.1} parent=1 // loop_header
      %s14 = sphi 0, %s18
      %p15 = scmp.ge.s32.totalorder %s14, 4
      %s24 = sphi 0, %s26
      %s27 = sphi 0, %s24
      %s28 = sphi 0, %s27
      %s44 = sphi 0, %s28
      %s48 = sphi 0, %s48
      %s50 = sphi 0, %s48
      %s51 = sphi 0, %s50
      %s65 = sphi 0, %s51
      %s69 = sphi 0, %s69
      %s71 = sphi 0, %s69
      %s72 = sphi 0, %s71
      %s86 = sphi 0, %s72
      %s90 = sphi 0, %s90
      %s92 = sphi 0, %s90
      %s93 = sphi 0, %s92
      %s107 = sphi 0, %s93
      %s111 = sphi 0, %s111
      %s113 = sphi 0, %s111
      %s114 = sphi 0, %s113
      %s128 = sphi 0, %s114
      %s134 = sphi 0, %s136
      %s137 = sphi 0, %s134
      %s138 = sphi 0, %s137
      %s154 = sphi 0, %s138
    $region4: #{tpu_custom_call.1} parent=1 // loop_header_branch
      %17 = sbr.rel (%p15) target = $region8
    $region5: #{tpu_custom_call.1} parent=1 // loop_body
      %s19 = ssub.s32 %s14, 1
      %s20 = ssub.s32 %s14, 2
      %s21 = sadd.s32 %s14, 1
      %s22 = ssub.s32 %s14, %s21
      %p23 = scmp.eq.s32.totalorder %s22, 0
      %s25 = sadd.s32 %s24, 1
      %s26 = scalar_select %p23, %s24, %s25
      %p29 = pneg %p23
      %p30 = scmp.eq.s32.totalorder %s14, 1
      %p31 = por %p29, %p30
      %p32 = scmp.ne.s32.totalorder %s24, %s27
      %p33 = scmp.eq.s32.totalorder %s14, 0
      %p34 = por %p32, %p33
      %p35 = scmp.ne.s32.totalorder %s24, %s27
      %p36 = scmp.eq.s32.totalorder %s19, 1
      %p37 = por %p35, %p36
      %p38 = scmp.ne.s32.totalorder %s27, %s28
      %p39 = scmp.eq.s32.totalorder %s19, 0
      %p40 = por %p38, %p39
      %p41 = scmp.ne.s32.totalorder %s27, %s28
      %p42 = scmp.eq.s32.totalorder %s20, 1
      %p43 = por %p41, %p42
      %p45 = scmp.ne.s32.totalorder %s28, %s44
      %p46 = scmp.eq.s32.totalorder %s20, 0
      %p47 = por %p45, %p46
      %s49 = sadd.s32 %s48, 1
      %p52 = scmp.eq.s32.totalorder %s14, 1
      %p53 = scmp.ne.s32.totalorder %s48, %s50
      %p54 = scmp.eq.s32.totalorder %s14, 0
      %p55 = por %p53, %p54
      %p56 = scmp.ne.s32.totalorder %s48, %s50
      %p57 = scmp.eq.s32.totalorder %s19, 1
      %p58 = por %p56, %p57
      %p59 = scmp.ne.s32.totalorder %s50, %s51
      %p60 = scmp.eq.s32.totalorder %s19, 0
      %p61 = por %p59, %p60
      %p62 = scmp.ne.s32.totalorder %s50, %s51
      %p63 = scmp.eq.s32.totalorder %s20, 1
      %p64 = por %p62, %p63
      %p66 = scmp.ne.s32.totalorder %s51, %s65
      %p67 = scmp.eq.s32.totalorder %s20, 0
      %p68 = por %p66, %p67
      %s70 = sadd.s32 %s69, 1
      %p73 = scmp.eq.s32.totalorder %s14, 1
      %p74 = scmp.ne.s32.totalorder %s69, %s71
      %p75 = scmp.eq.s32.totalorder %s14, 0
      %p76 = por %p74, %p75
      %p77 = scmp.ne.s32.totalorder %s69, %s71
      %p78 = scmp.eq.s32.totalorder %s19, 1
      %p79 = por %p77, %p78
      %p80 = scmp.ne.s32.totalorder %s71, %s72
      %p81 = scmp.eq.s32.totalorder %s19, 0
      %p82 = por %p80, %p81
      %p83 = scmp.ne.s32.totalorder %s71, %s72
      %p84 = scmp.eq.s32.totalorder %s20, 1
      %p85 = por %p83, %p84
      %p87 = scmp.ne.s32.totalorder %s72, %s86
      %p88 = scmp.eq.s32.totalorder %s20, 0
      %p89 = por %p87, %p88
      %s91 = sadd.s32 %s90, 1
      %p94 = scmp.eq.s32.totalorder %s14, 1
      %p95 = scmp.ne.s32.totalorder %s90, %s92
      %p96 = scmp.eq.s32.totalorder %s14, 0
      %p97 = por %p95, %p96
      %p98 = scmp.ne.s32.totalorder %s90, %s92
      %p99 = scmp.eq.s32.totalorder %s19, 1
      %p100 = por %p98, %p99
      %p101 = scmp.ne.s32.totalorder %s92, %s93
      %p102 = scmp.eq.s32.totalorder %s19, 0
      %p103 = por %p101, %p102
      %p104 = scmp.ne.s32.totalorder %s92, %s93
      %p105 = scmp.eq.s32.totalorder %s20, 1
      %p106 = por %p104, %p105
      %p108 = scmp.ne.s32.totalorder %s93, %s107
      %p109 = scmp.eq.s32.totalorder %s20, 0
      %p110 = por %p108, %p109
      %s112 = sadd.s32 %s111, 1
      %p115 = scmp.eq.s32.totalorder %s14, 1
      %p116 = scmp.ne.s32.totalorder %s111, %s113
      %p117 = scmp.eq.s32.totalorder %s14, 0
      %p118 = por %p116, %p117
      %p119 = scmp.ne.s32.totalorder %s111, %s113
      %p120 = scmp.eq.s32.totalorder %s19, 1
      %p121 = por %p119, %p120
      %p122 = scmp.ne.s32.totalorder %s113, %s114
      %p123 = scmp.eq.s32.totalorder %s19, 0
      %p124 = por %p122, %p123
      %p125 = scmp.ne.s32.totalorder %s113, %s114
      %p126 = scmp.eq.s32.totalorder %s20, 1
      %p127 = por %p125, %p126
      %p129 = scmp.ne.s32.totalorder %s114, %s128
      %p130 = scmp.eq.s32.totalorder %s20, 0
      %p131 = por %p129, %p130
      %s132 = ssub.s32 %s14, %s21
      %p133 = scmp.eq.s32.totalorder %s132, 0
      %s135 = sadd.s32 %s134, 1
      %s136 = scalar_select %p133, %s134, %s135
      %p139 = pneg %p133
      %p140 = scmp.eq.s32.totalorder %s14, 1
      %p141 = por %p139, %p140
      %p142 = scmp.ne.s32.totalorder %s134, %s137
      %p143 = scmp.eq.s32.totalorder %s14, 0
      %p144 = por %p142, %p143
      %p145 = scmp.ne.s32.totalorder %s134, %s137
      %p146 = scmp.eq.s32.totalorder %s19, 1
      %p147 = por %p145, %p146
      %p148 = scmp.ne.s32.totalorder %s137, %s138
      %p149 = scmp.eq.s32.totalorder %s19, 0
      %p150 = por %p148, %p149
      %p151 = scmp.ne.s32.totalorder %s137, %s138
      %p152 = scmp.eq.s32.totalorder %s20, 1
      %p153 = por %p151, %p152
      %p155 = scmp.ne.s32.totalorder %s138, %s154
      %p156 = scmp.eq.s32.totalorder %s20, 0
      %p157 = por %p155, %p156
      %p158 = scmp.le.s32.totalorder 1, %s14
      %p159 = scmp.lt.s32.totalorder %s14, 3
      %p160 = pnand %p158, %p159
      %p161 = pneg %p160
      // Predicated region
      $region9: #{tpu_custom_call.1} parent=5 // pred_check
        _
      $region10: #{tpu_custom_call.1} parent=5 // pred_check_branch
        %163 = sbr.rel (%p160) target = $region12
      $region11: #{tpu_custom_call.1} parent=5 // pred_region
        %s164 = ssub.s32 %s14, 1
        // Predicated region
        $region13: #{tpu_custom_call.1} parent=11 // pred_check
          %p165 = pneg %p61
        $region14: #{tpu_custom_call.1} parent=11 // pred_check_branch
          %167 = sbr.rel (%p165) target = $region16
        $region15: #{tpu_custom_call.1} parent=11 // pred_region
          _
        $region16: #{tpu_custom_call.1} parent=11 // pred_fallthru
          _
        // Predicated region
        $region17: #{tpu_custom_call.1} parent=11 // pred_check
          %p168 = pneg %p82
        $region18: #{tpu_custom_call.1} parent=11 // pred_check_branch
          %170 = sbr.rel (%p168) target = $region20
        $region19: #{tpu_custom_call.1} parent=11 // pred_region
          _
        $region20: #{tpu_custom_call.1} parent=11 // pred_fallthru
          _
        // Predicated region
        $region21: #{tpu_custom_call.1} parent=11 // pred_check
          %p171 = pneg %p103
        $region22: #{tpu_custom_call.1} parent=11 // pred_check_branch
          %173 = sbr.rel (%p171) target = $region24
        $region23: #{tpu_custom_call.1} parent=11 // pred_region
          _
        $region24: #{tpu_custom_call.1} parent=11 // pred_fallthru
          _
        // Predicated region
        $region25: #{tpu_custom_call.1} parent=11 // pred_check
          %p174 = pneg %p124
        $region26: #{tpu_custom_call.1} parent=11 // pred_check_branch
          %176 = sbr.rel (%p174) target = $region28
        $region27: #{tpu_custom_call.1} parent=11 // pred_region
          _
        $region28: #{tpu_custom_call.1} parent=11 // pred_fallthru
          _
      $region12: #{tpu_custom_call.1} parent=5 // pred_fallthru
        _
      %p177 = scmp.lt.s32.totalorder %s14, 2
      // Predicated region
      $region29: #{tpu_custom_call.1} parent=5 // pred_check
        %p178 = pneg %p177
      $region30: #{tpu_custom_call.1} parent=5 // pred_check_branch
        %180 = sbr.rel (%p178) target = $region32
      $region31: #{tpu_custom_call.1} parent=5 // pred_region
        // Predicated region
        $region33: #{tpu_custom_call.1} parent=31 // pred_check
          %p181 = pneg %p34
        $region34: #{tpu_custom_call.1} parent=31 // pred_check_branch
          %183 = sbr.rel (%p181) target = $region36
        $region35: #{tpu_custom_call.1} parent=31 // pred_region
          %s184 = smul.u32 8, %s14
          %p185 = scmp.lt.s32.totalorder %s184, 15
          %s186 = scalar_select %p185, %s184, 15
          %s187 = smul.addr %s186, 4
          %s188 = scalar_lea.vmem %s0, %s187
          %s189 = smul.u32 8, %s14
        $region36: #{tpu_custom_call.1} parent=31 // pred_fallthru
          _
      $region32: #{tpu_custom_call.1} parent=5 // pred_fallthru
        _
      %p190 = scmp.le.s32.totalorder 1, %s14
      %p191 = scmp.lt.s32.totalorder %s14, 3
      %p192 = pnand %p190, %p191
      %p193 = pneg %p192
      // Predicated region
      $region37: #{tpu_custom_call.1} parent=5 // pred_check
        _
      $region38: #{tpu_custom_call.1} parent=5 // pred_check_branch
        %195 = sbr.rel (%p192) target = $region40
      $region39: #{tpu_custom_call.1} parent=5 // pred_region
        %s196 = ssub.s32 %s14, 1
        %s197 = smul.u32 8, %s19
        %p198 = scmp.lt.s32.totalorder %s197, 15
        %s199 = scalar_select %p198, %s197, 15
        %s200 = smul.addr %s199, 4
        %s201 = scalar_lea.vmem %s0, %s200
        %p202 = pneg %p40
        %p203 = pneg %p37
        %p204 = pneg %p61
        %p205 = pneg %p58
        %p206 = pneg %p82
        %p207 = pneg %p79
        %p208 = pneg %p103
        %p209 = pneg %p100
        %p210 = pneg %p124
        %p211 = pneg %p121
        %p212 = pneg %p150
        %p213 = pneg %p147
        %s214 = sand.u32 %s137, 1
        %s215 = scalar_lea.sflag [#allocation3], %s214
        %s216 = sand.u32 %s137, 1
        %s217 = smul.addr %s216, 16
        %s218 = scalar_lea.vmem [#allocation2], %s217
        %s219 = smul.u32 8, %s19
        %p220 = scmp.lt.s32.totalorder %s219, 15
        %s221 = scalar_select %p220, %s219, 15
        %s222 = smul.addr %s221, 4
        %s223 = scalar_lea.vmem %s0, %s222
        %s224 = smul.u32 8, %s19
        %s225 = smul.u32 2, %s19
        %v227 = vld [vmem:[%s223] sm:$0xf]
        %v228 = vld [vmem:[%s223 + $0x4] sm:$0xf]
        %v229 = vld [vmem:[%s223 + $0x8] sm:$0xf]
        %v230 = vld [vmem:[%s223 + $0xc] sm:$0xf]
        %v231 = vld [vmem:[%s223 + $0x10] sm:$0xf]
        %v232 = vld [vmem:[%s223 + $0x14] sm:$0xf]
        %v233 = vld [vmem:[%s223 + $0x18] sm:$0xf]
        %v234 = vld [vmem:[%s223 + $0x1c] sm:$0xf]
        %v243 = vunpack.c.l.b16 %v227
        %v244 = vunpack.c.l.b16 %v228
        %v245 = vunpack.c.l.b16 %v229
        %v246 = vunpack.c.l.b16 %v230
        %v247 = vunpack.c.l.b16 %v231
        %v248 = vunpack.c.l.b16 %v232
        %v249 = vunpack.c.l.b16 %v233
        %v250 = vunpack.c.l.b16 %v234
        %v251 = vpack.c.b16 %v244, %v243
        %v252 = vpack.c.b16 %v246, %v245
        %v253 = vpack.c.b16 %v248, %v247
        %v254 = vpack.c.b16 %v250, %v249
        %v256 = vshrl.u32 %v251, 16
        %v258 = vrot.slane %v256, 7
        %v259 = vshll.u32 %v251, 16
        %v261 = vor.u32 %v258, %v259
        %v263 = vshrl.u32 %v252, 16
        %v265 = vrot.slane %v263, 7
        %v266 = vshll.u32 %v252, 16
        %v268 = vor.u32 %v265, %v266
        %v270 = vshrl.u32 %v253, 16
        %v272 = vrot.slane %v270, 7
        %v273 = vshll.u32 %v253, 16
        %v275 = vor.u32 %v272, %v273
        %v277 = vshrl.u32 %v254, 16
        %v279 = vrot.slane %v277, 7
        %v280 = vshll.u32 %v254, 16
        %v282 = vor.u32 %v279, %v280
        %vm287 = vcmask 1040384
        %vm288 = vsmask.f32 256
        %vm289 = vmand %vm287, %vm288
        %v290 = vsel %vm289, 0, %v261
        %v291 = vsel %vm289, 0, %v268
        %v292 = vsel %vm289, 0, %v275
        %v293 = vsel %vm289, 0, %v282
        %v294 = vrot.slane %v259, 1
        %v295 = vor.u32 %v256, %v294
        %v296 = vrot.slane %v266, 1
        %v297 = vor.u32 %v263, %v296
        %v298 = vrot.slane %v273, 1
        %v299 = vor.u32 %v270, %v298
        %v300 = vrot.slane %v280, 1
        %v301 = vor.u32 %v277, %v300
        %vm306 = vcmask 1047552
        %vm307 = vsmask.f32 7424
        %vm308 = vmand %vm306, %vm307
        %v309 = vsel %vm308, %v295, 0
        %v310 = vsel %vm308, %v297, 0
        %v311 = vsel %vm308, %v299, 0
        %v312 = vsel %vm308, %v301, 0
        %313 = vrot.lane.b32.xlu0 %v251, 64
        %v314 = vpop.permute.xlu0 %313
        %315 = vrot.lane.b32.xlu0 %v252, 64
        %v316 = vpop.permute.xlu0 %315
        %317 = vrot.lane.b32.xlu0 %v253, 64
        %v318 = vpop.permute.xlu0 %317
        %319 = vrot.lane.b32.xlu0 %v254, 64
        %v320 = vpop.permute.xlu0 %319
        %vm321 = vcmask 523264
        %v324 = vsel %vm321, %v290, %v314
        %v328 = vsel %vm321, %v291, %v316
        %v332 = vsel %vm321, %v292, %v318
        %v336 = vsel %vm321, %v293, %v320
        %v338 = vld [vmem:[%s1] sm:$0xf]
        %v339 = vld [vmem:[%s1 + $0x4] sm:$0xf]
        %v340 = vld [vmem:[%s1 + $0x8] sm:$0xf]
        %v341 = vld [vmem:[%s1 + $0xc] sm:$0xf]
        %v342 = vld [vmem:[%s1 + $0x10] sm:$0xf]
        %v343 = vld [vmem:[%s1 + $0x14] sm:$0xf]
        %v344 = vld [vmem:[%s1 + $0x18] sm:$0xf]
        %v345 = vld [vmem:[%s1 + $0x1c] sm:$0xf]
        %v346 = vld [vmem:[%s1 + $0x20] sm:$0xf]
        %v347 = vld [vmem:[%s1 + $0x24] sm:$0xf]
        %v348 = vld [vmem:[%s1 + $0x28] sm:$0xf]
        %v349 = vld [vmem:[%s1 + $0x2c] sm:$0xf]
        %v350 = vld [vmem:[%s1 + $0x30] sm:$0xf]
        %v351 = vld [vmem:[%s1 + $0x34] sm:$0xf]
        %v352 = vld [vmem:[%s1 + $0x38] sm:$0xf]
        %v353 = vld [vmem:[%s1 + $0x3c] sm:$0xf]
        %v354 = vld [vmem:[%s1 + $0x40] sm:$0xf]
        %v355 = vld [vmem:[%s1 + $0x44] sm:$0xf]
        %v356 = vld [vmem:[%s1 + $0x48] sm:$0xf]
        %v357 = vld [vmem:[%s1 + $0x4c] sm:$0xf]
        %v358 = vld [vmem:[%s1 + $0x50] sm:$0xf]
        %v359 = vld [vmem:[%s1 + $0x54] sm:$0xf]
        %v360 = vld [vmem:[%s1 + $0x58] sm:$0xf]
        %v361 = vld [vmem:[%s1 + $0x5c] sm:$0xf]
        %v362 = vld [vmem:[%s2] sm:$0x1]
        %v364 = vlaneseq
        %v365 = vshrl.u32 %v364, 7
        %v366 = vsub.s32 0, %v365
        %v367 = vrot.slane %v362, %v366
        %v393 = vunpack.c.l.b16 %v338
        %v394 = vunpack.c.l.b16 %v339
        %v395 = vunpack.c.l.b16 %v340
        %v396 = vunpack.c.l.b16 %v341
        %v397 = vunpack.c.l.b16 %v342
        %v398 = vunpack.c.l.b16 %v343
        %v399 = vunpack.c.l.b16 %v344
        %v400 = vunpack.c.l.b16 %v345
        %v401 = vunpack.c.l.b16 %v346
        %v402 = vunpack.c.l.b16 %v347
        %v403 = vunpack.c.l.b16 %v348
        %v404 = vunpack.c.l.b16 %v349
        %v405 = vunpack.c.l.b16 %v350
        %v406 = vunpack.c.l.b16 %v351
        %v407 = vunpack.c.l.b16 %v352
        %v408 = vunpack.c.l.b16 %v353
        %v409 = vunpack.c.l.b16 %v354
        %v410 = vunpack.c.l.b16 %v355
        %v411 = vunpack.c.l.b16 %v356
        %v412 = vunpack.c.l.b16 %v357
        %v413 = vunpack.c.l.b16 %v358
        %v414 = vunpack.c.l.b16 %v359
        %v415 = vunpack.c.l.b16 %v360
        %v416 = vunpack.c.l.b16 %v361
        %v417 = vpack.c.b16 %v394, %v393
        %v418 = vpack.c.b16 %v396, %v395
        %v419 = vpack.c.b16 %v398, %v397
        %v420 = vpack.c.b16 %v400, %v399
        %v421 = vpack.c.b16 %v402, %v401
        %v422 = vpack.c.b16 %v404, %v403
        %v423 = vpack.c.b16 %v406, %v405
        %v424 = vpack.c.b16 %v408, %v407
        %v425 = vpack.c.b16 %v410, %v409
        %v426 = vpack.c.b16 %v412, %v411
        %v427 = vpack.c.b16 %v414, %v413
        %v428 = vpack.c.b16 %v416, %v415
        %v442 = vsel %vm321, %v309, 0
        %v445 = vsel %vm321, %v310, 0
        %v448 = vsel %vm321, %v311, 0
        %v451 = vsel %vm321, %v312, 0
        %453 = vmatprep.subr.bf16.mxu0 0
        %454 = vmatpush1.bf16.msra.mxu0 %v424
        %455 = vmatprep.subr.bf16.mxu0 0
        %456 = vmatpush1.bf16.msra.mxu0 %v423
        %457 = vmatprep.subr.bf16.mxu0 0
        %458 = vmatpush1.bf16.msra.mxu0 %v422
        %459 = vmatprep.subr.bf16.mxu0 0
        %460 = vmatpush1.bf16.msra.mxu0 %v421
        %461 = vmatprep.subr.bf16.mxu0 0
        %462 = vmatpush1.bf16.msra.mxu0 %v420
        %463 = vmatprep.subr.bf16.mxu0 0
        %464 = vmatpush1.bf16.msra.mxu0 %v419
        %465 = vmatprep.subr.bf16.mxu0 0
        %466 = vmatpush1.bf16.msra.mxu0 %v418
        %467 = vmatprep.subr.bf16.mxu0 0
        %468 = vmatpush1.bf16.msra.mxu0 %v417
        %469 = vmatprep.subr.bf16.mxu0 0
        %470 = vmatpush2.bf16.msra.mxu0 0
        %471 = vmatprep.subr.bf16.mxu0 0
        %472 = vmatpush2.bf16.msra.mxu0 0
        %473 = vmatprep.subr.bf16.mxu0 0
        %474 = vmatpush2.bf16.msra.mxu0 0
        %475 = vmatprep.subr.bf16.mxu0 0
        %476 = vmatpush2.bf16.msra.mxu0 0
        %477 = vmatprep.subr.bf16.mxu0 0
        %478 = vmatpush2.bf16.msra.mxu0 %v428
        %479 = vmatprep.subr.bf16.mxu0 0
        %480 = vmatpush2.bf16.msra.mxu0 %v427
        %481 = vmatprep.subr.bf16.mxu0 0
        %482 = vmatpush2.bf16.msra.mxu0 %v426
        %483 = vmatprep.subr.bf16.mxu0 0
        %484 = vmatpush2.bf16.msra.mxu0 %v425
        %485 = vmatprep.mubr.bf16.mxu0 %v442
        %486 = vmatmul.mubr.bf16.gmra.mxu0 %v324
        %v487 = vpop.f32.mrf.mxu0
        %v488 = vadd.f32 %v367, %v487
        %v489 = vpop.f32.mrf.mxu0
        %v490 = vpop.f32.mrf.mxu0
        %v491 = vadd.f32 %v367, %v490
        %v492 = vpop.f32.mrf.mxu0
        %493 = vmatprep.mubr.bf16.mxu0 %v445
        %494 = vmatmul.mubr.bf16.gmra.mxu0 %v328
        %v495 = vpop.f32.mrf.mxu0
        %v496 = vadd.f32 %v367, %v495
        %v497 = vpop.f32.mrf.mxu0
        %v498 = vpop.f32.mrf.mxu0
        %v499 = vadd.f32 %v367, %v498
        %v500 = vpop.f32.mrf.mxu0
        %501 = vmatprep.mubr.bf16.mxu0 %v448
        %502 = vmatmul.mubr.bf16.gmra.mxu0 %v332
        %v503 = vpop.f32.mrf.mxu0
        %v504 = vadd.f32 %v367, %v503
        %v505 = vpop.f32.mrf.mxu0
        %v506 = vpop.f32.mrf.mxu0
        %v507 = vadd.f32 %v367, %v506
        %v508 = vpop.f32.mrf.mxu0
        %509 = vmatprep.mubr.bf16.mxu0 %v451
        %510 = vmatmul.mubr.bf16.gmra.mxu0 %v336
        %v511 = vpop.f32.mrf.mxu0
        %v512 = vadd.f32 %v367, %v511
        %v513 = vpop.f32.mrf.mxu0
        %v514 = vpop.f32.mrf.mxu0
        %v515 = vadd.f32 %v367, %v514
        %v516 = vpop.f32.mrf.mxu0
        %517 = vdwg.mxu0
        %v526 = vcombine.high %v488, %v488
        %v528 = vunpack.c.l.s4 1983009808
        %v529 = vunpack.c.0.s8 %v528
        %v530 = vlaneseq
        %v531 = vshrl.u32 %v530, 7
        %v532 = vsub.s32 %v529, %v531
        %v533 = vrot.slane %v488, %v532
        %v535 = vunpack.c.l.s4 1983009808
        %v536 = vunpack.c.0.s8 %v535
        %v537 = vlaneseq
        %v538 = vshrl.u32 %v537, 7
        %v539 = vsub.s32 %v536, %v538
        %v540 = vrot.slane %v526, %v539
        %v541 = vcombine.high %v533, %v533
        %v542 = vcombine.high %v540, %v540
        %v543 = vcombine.high %v491, %v491
        %v545 = vunpack.c.l.s4 1983009808
        %v546 = vunpack.c.0.s8 %v545
        %v547 = vlaneseq
        %v548 = vshrl.u32 %v547, 7
        %v549 = vsub.s32 %v546, %v548
        %v550 = vrot.slane %v491, %v549
        %v552 = vunpack.c.l.s4 1983009808
        %v553 = vunpack.c.0.s8 %v552
        %v554 = vlaneseq
        %v555 = vshrl.u32 %v554, 7
        %v556 = vsub.s32 %v553, %v555
        %v557 = vrot.slane %v543, %v556
        %v558 = vcombine.high %v550, %v550
        %v559 = vcombine.high %v557, %v557
        %v560 = vcombine.high %v496, %v496
        %v562 = vunpack.c.l.s4 1983009808
        %v563 = vunpack.c.0.s8 %v562
        %v564 = vlaneseq
        %v565 = vshrl.u32 %v564, 7
        %v566 = vsub.s32 %v563, %v565
        %v567 = vrot.slane %v496, %v566
        %v569 = vunpack.c.l.s4 1983009808
        %v570 = vunpack.c.0.s8 %v569
        %v571 = vlaneseq
        %v572 = vshrl.u32 %v571, 7
        %v573 = vsub.s32 %v570, %v572
        %v574 = vrot.slane %v560, %v573
        %v575 = vcombine.high %v567, %v567
        %v576 = vcombine.high %v574, %v574
        %v577 = vcombine.high %v499, %v499
        %v579 = vunpack.c.l.s4 1983009808
        %v580 = vunpack.c.0.s8 %v579
        %v581 = vlaneseq
        %v582 = vshrl.u32 %v581, 7
        %v583 = vsub.s32 %v580, %v582
        %v584 = vrot.slane %v499, %v583
        %v586 = vunpack.c.l.s4 1983009808
        %v587 = vunpack.c.0.s8 %v586
        %v588 = vlaneseq
        %v589 = vshrl.u32 %v588, 7
        %v590 = vsub.s32 %v587, %v589
        %v591 = vrot.slane %v577, %v590
        %v592 = vcombine.high %v584, %v584
        %v593 = vcombine.high %v591, %v591
        %v594 = vcombine.high %v504, %v504
        %v596 = vunpack.c.l.s4 1983009808
        %v597 = vunpack.c.0.s8 %v596
        %v598 = vlaneseq
        %v599 = vshrl.u32 %v598, 7
        %v600 = vsub.s32 %v597, %v599
        %v601 = vrot.slane %v504, %v600
        %v603 = vunpack.c.l.s4 1983009808
        %v604 = vunpack.c.0.s8 %v603
        %v605 = vlaneseq
        %v606 = vshrl.u32 %v605, 7
        %v607 = vsub.s32 %v604, %v606
        %v608 = vrot.slane %v594, %v607
        %v609 = vcombine.high %v601, %v601
        %v610 = vcombine.high %v608, %v608
        %v611 = vcombine.high %v507, %v507
        %v613 = vunpack.c.l.s4 1983009808
        %v614 = vunpack.c.0.s8 %v613
        %v615 = vlaneseq
        %v616 = vshrl.u32 %v615, 7
        %v617 = vsub.s32 %v614, %v616
        %v618 = vrot.slane %v507, %v617
        %v620 = vunpack.c.l.s4 1983009808
        %v621 = vunpack.c.0.s8 %v620
        %v622 = vlaneseq
        %v623 = vshrl.u32 %v622, 7
        %v624 = vsub.s32 %v621, %v623
        %v625 = vrot.slane %v611, %v624
        %v626 = vcombine.high %v618, %v618
        %v627 = vcombine.high %v625, %v625
        %v628 = vcombine.high %v512, %v512
        %v630 = vunpack.c.l.s4 1983009808
        %v631 = vunpack.c.0.s8 %v630
        %v632 = vlaneseq
        %v633 = vshrl.u32 %v632, 7
        %v634 = vsub.s32 %v631, %v633
        %v635 = vrot.slane %v512, %v634
        %v637 = vunpack.c.l.s4 1983009808
        %v638 = vunpack.c.0.s8 %v637
        %v639 = vlaneseq
        %v640 = vshrl.u32 %v639, 7
        %v641 = vsub.s32 %v638, %v640
        %v642 = vrot.slane %v628, %v641
        %v643 = vcombine.high %v635, %v635
        %v644 = vcombine.high %v642, %v642
        %v645 = vcombine.high %v515, %v515
        %v647 = vunpack.c.l.s4 1983009808
        %v648 = vunpack.c.0.s8 %v647
        %v649 = vlaneseq
        %v650 = vshrl.u32 %v649, 7
        %v651 = vsub.s32 %v648, %v650
        %v652 = vrot.slane %v515, %v651
        %v654 = vunpack.c.l.s4 1983009808
        %v655 = vunpack.c.0.s8 %v654
        %v656 = vlaneseq
        %v657 = vshrl.u32 %v656, 7
        %v658 = vsub.s32 %v655, %v657
        %v659 = vrot.slane %v645, %v658
        %v660 = vcombine.high %v652, %v652
        %v661 = vcombine.high %v659, %v659
        %v694 = vlaneseq
        %v695 = vshrl.u32 %v694, 7
        %v696 = vsub.s32 1, %v695
        %v697 = vrot.slane %v533, %v696
        %v698 = vlaneseq
        %v699 = vshrl.u32 %v698, 7
        %v700 = vsub.s32 1, %v699
        %v701 = vrot.slane %v541, %v700
        %v702 = vlaneseq
        %v703 = vshrl.u32 %v702, 7
        %v704 = vsub.s32 1, %v703
        %v705 = vrot.slane %v540, %v704
        %v706 = vlaneseq
        %v707 = vshrl.u32 %v706, 7
        %v708 = vsub.s32 1, %v707
        %v709 = vrot.slane %v542, %v708
        %v710 = vlaneseq
        %v711 = vshrl.u32 %v710, 7
        %v712 = vsub.s32 1, %v711
        %v713 = vrot.slane %v550, %v712
        %v714 = vlaneseq
        %v715 = vshrl.u32 %v714, 7
        %v716 = vsub.s32 1, %v715
        %v717 = vrot.slane %v558, %v716
        %v718 = vlaneseq
        %v719 = vshrl.u32 %v718, 7
        %v720 = vsub.s32 1, %v719
        %v721 = vrot.slane %v557, %v720
        %v722 = vlaneseq
        %v723 = vshrl.u32 %v722, 7
        %v724 = vsub.s32 1, %v723
        %v725 = vrot.slane %v567, %v724
        %v726 = vlaneseq
        %v727 = vshrl.u32 %v726, 7
        %v728 = vsub.s32 1, %v727
        %v729 = vrot.slane %v575, %v728
        %v730 = vlaneseq
        %v731 = vshrl.u32 %v730, 7
        %v732 = vsub.s32 1, %v731
        %v733 = vrot.slane %v574, %v732
        %v734 = vlaneseq
        %v735 = vshrl.u32 %v734, 7
        %v736 = vsub.s32 1, %v735
        %v737 = vrot.slane %v576, %v736
        %v738 = vlaneseq
        %v739 = vshrl.u32 %v738, 7
        %v740 = vsub.s32 1, %v739
        %v741 = vrot.slane %v584, %v740
        %v742 = vlaneseq
        %v743 = vshrl.u32 %v742, 7
        %v744 = vsub.s32 1, %v743
        %v745 = vrot.slane %v592, %v744
        %v746 = vlaneseq
        %v747 = vshrl.u32 %v746, 7
        %v748 = vsub.s32 1, %v747
        %v749 = vrot.slane %v591, %v748
        %v750 = vlaneseq
        %v751 = vshrl.u32 %v750, 7
        %v752 = vsub.s32 1, %v751
        %v753 = vrot.slane %v601, %v752
        %v754 = vlaneseq
        %v755 = vshrl.u32 %v754, 7
        %v756 = vsub.s32 1, %v755
        %v757 = vrot.slane %v609, %v756
        %v758 = vlaneseq
        %v759 = vshrl.u32 %v758, 7
        %v760 = vsub.s32 1, %v759
        %v761 = vrot.slane %v608, %v760
        %v762 = vlaneseq
        %v763 = vshrl.u32 %v762, 7
        %v764 = vsub.s32 1, %v763
        %v765 = vrot.slane %v610, %v764
        %v766 = vlaneseq
        %v767 = vshrl.u32 %v766, 7
        %v768 = vsub.s32 1, %v767
        %v769 = vrot.slane %v618, %v768
        %v770 = vlaneseq
        %v771 = vshrl.u32 %v770, 7
        %v772 = vsub.s32 1, %v771
        %v773 = vrot.slane %v626, %v772
        %v774 = vlaneseq
        %v775 = vshrl.u32 %v774, 7
        %v776 = vsub.s32 1, %v775
        %v777 = vrot.slane %v625, %v776
        %v778 = vlaneseq
        %v779 = vshrl.u32 %v778, 7
        %v780 = vsub.s32 1, %v779
        %v781 = vrot.slane %v635, %v780
        %v782 = vlaneseq
        %v783 = vshrl.u32 %v782, 7
        %v784 = vsub.s32 1, %v783
        %v785 = vrot.slane %v643, %v784
        %v786 = vlaneseq
        %v787 = vshrl.u32 %v786, 7
        %v788 = vsub.s32 1, %v787
        %v789 = vrot.slane %v642, %v788
        %v790 = vlaneseq
        %v791 = vshrl.u32 %v790, 7
        %v792 = vsub.s32 1, %v791
        %v793 = vrot.slane %v644, %v792
        %v794 = vlaneseq
        %v795 = vshrl.u32 %v794, 7
        %v796 = vsub.s32 1, %v795
        %v797 = vrot.slane %v652, %v796
        %v798 = vlaneseq
        %v799 = vshrl.u32 %v798, 7
        %v800 = vsub.s32 1, %v799
        %v801 = vrot.slane %v660, %v800
        %v802 = vlaneseq
        %v803 = vshrl.u32 %v802, 7
        %v804 = vsub.s32 1, %v803
        %v805 = vrot.slane %v659, %v804
        %vm806 = vcmask 1042434
        %v807 = vsel %vm806, %v701, %v697
        %vm808 = vcmask 1043459
        %v809 = vsel %vm808, %v705, %v807
        %vm810 = vcmask 1044484
        %v811 = vsel %vm810, %v709, %v809
        %vm812 = vcmask 1045509
        %v813 = vsel %vm812, %v713, %v811
        %vm814 = vcmask 1046534
        %v815 = vsel %vm814, %v717, %v813
        %vm816 = vcmask 1047559
        %v817 = vsel %vm816, %v721, %v815
        %v818 = vsel %vm806, %v729, %v725
        %v819 = vsel %vm808, %v733, %v818
        %v820 = vsel %vm810, %v737, %v819
        %v821 = vsel %vm812, %v741, %v820
        %v822 = vsel %vm814, %v745, %v821
        %v823 = vsel %vm816, %v749, %v822
        %v824 = vsel %vm806, %v757, %v753
        %v825 = vsel %vm808, %v761, %v824
        %v826 = vsel %vm810, %v765, %v825
        %v827 = vsel %vm812, %v769, %v826
        %v828 = vsel %vm814, %v773, %v827
        %v829 = vsel %vm816, %v777, %v828
        %v830 = vsel %vm806, %v785, %v781
        %v831 = vsel %vm808, %v789, %v830
        %v832 = vsel %vm810, %v793, %v831
        %v833 = vsel %vm812, %v797, %v832
        %v834 = vsel %vm814, %v801, %v833
        %v835 = vsel %vm816, %v805, %v834
        %vm840 = vcmask 1040384
        %v841 = vsel %vm840, -inf, %v817
        %v842 = vsel %vm840, -inf, %v823
        %v843 = vsel %vm840, -inf, %v829
        %v844 = vsel %vm840, -inf, %v835
        %v845 = vrot.slane %v533, 7
        %v846 = vrot.slane %v845, 2
        %v847 = vrot.slane %v541, 7
        %v848 = vrot.slane %v847, 2
        %v849 = vrot.slane %v540, 7
        %v850 = vrot.slane %v849, 2
        %v851 = vrot.slane %v542, 7
        %v852 = vrot.slane %v851, 2
        %v853 = vrot.slane %v550, 7
        %v854 = vrot.slane %v853, 2
        %v855 = vrot.slane %v558, 7
        %v856 = vrot.slane %v855, 2
        %v857 = vrot.slane %v557, 7
        %v858 = vrot.slane %v857, 2
        %v859 = vrot.slane %v559, 7
        %v860 = vrot.slane %v859, 2
        %v861 = vrot.slane %v567, 7
        %v862 = vrot.slane %v861, 2
        %v863 = vrot.slane %v575, 7
        %v864 = vrot.slane %v863, 2
        %v865 = vrot.slane %v574, 7
        %v866 = vrot.slane %v865, 2
        %v867 = vrot.slane %v576, 7
        %v868 = vrot.slane %v867, 2
        %v869 = vrot.slane %v584, 7
        %v870 = vrot.slane %v869, 2
        %v871 = vrot.slane %v592, 7
        %v872 = vrot.slane %v871, 2
        %v873 = vrot.slane %v591, 7
        %v874 = vrot.slane %v873, 2
        %v875 = vrot.slane %v593, 7
        %v876 = vrot.slane %v875, 2
        %v877 = vrot.slane %v601, 7
        %v878 = vrot.slane %v877, 2
        %v879 = vrot.slane %v609, 7
        %v880 = vrot.slane %v879, 2
        %v881 = vrot.slane %v608, 7
        %v882 = vrot.slane %v881, 2
        %v883 = vrot.slane %v610, 7
        %v884 = vrot.slane %v883, 2
        %v885 = vrot.slane %v618, 7
        %v886 = vrot.slane %v885, 2
        %v887 = vrot.slane %v626, 7
        %v888 = vrot.slane %v887, 2
        %v889 = vrot.slane %v625, 7
        %v890 = vrot.slane %v889, 2
        %v891 = vrot.slane %v627, 7
        %v892 = vrot.slane %v891, 2
        %v893 = vrot.slane %v635, 7
        %v894 = vrot.slane %v893, 2
        %v895 = vrot.slane %v643, 7
        %v896 = vrot.slane %v895, 2
        %v897 = vrot.slane %v642, 7
        %v898 = vrot.slane %v897, 2
        %v899 = vrot.slane %v644, 7
        %v900 = vrot.slane %v899, 2
        %v901 = vrot.slane %v652, 7
        %v902 = vrot.slane %v901, 2
        %v903 = vrot.slane %v660, 7
        %v904 = vrot.slane %v903, 2
        %v905 = vrot.slane %v659, 7
        %v906 = vrot.slane %v905, 2
        %v907 = vrot.slane %v661, 7
        %v908 = vrot.slane %v907, 2
        %v941 = vmax.f32 %v533, %v846
        %v942 = vmax.f32 %v541, %v848
        %v943 = vmax.f32 %v540, %v850
        %v944 = vmax.f32 %v542, %v852
        %v945 = vmax.f32 %v550, %v854
        %v946 = vmax.f32 %v558, %v856
        %v947 = vmax.f32 %v557, %v858
        %v948 = vmax.f32 %v559, %v860
        %v949 = vmax.f32 %v567, %v862
        %v950 = vmax.f32 %v575, %v864
        %v951 = vmax.f32 %v574, %v866
        %v952 = vmax.f32 %v576, %v868
        %v953 = vmax.f32 %v584, %v870
        %v954 = vmax.f32 %v592, %v872
        %v955 = vmax.f32 %v591, %v874
        %v956 = vmax.f32 %v593, %v876
        %v957 = vmax.f32 %v601, %v878
        %v958 = vmax.f32 %v609, %v880
        %v959 = vmax.f32 %v608, %v882
        %v960 = vmax.f32 %v610, %v884
        %v961 = vmax.f32 %v618, %v886
        %v962 = vmax.f32 %v626, %v888
        %v963 = vmax.f32 %v625, %v890
        %v964 = vmax.f32 %v627, %v892
        %v965 = vmax.f32 %v635, %v894
        %v966 = vmax.f32 %v643, %v896
        %v967 = vmax.f32 %v642, %v898
        %v968 = vmax.f32 %v644, %v900
        %v969 = vmax.f32 %v652, %v902
        %v970 = vmax.f32 %v660, %v904
        %v971 = vmax.f32 %v659, %v906
        %v972 = vmax.f32 %v661, %v908
        %v977 = vcombine.high %v841, %v841
        %v979 = vunpack.c.l.s4 1983009808
        %v980 = vunpack.c.0.s8 %v979
        %v981 = vlaneseq
        %v982 = vshrl.u32 %v981, 7
        %v983 = vsub.s32 %v980, %v982
        %v984 = vrot.slane %v841, %v983
        %v986 = vunpack.c.l.s4 1983009808
        %v987 = vunpack.c.0.s8 %v986
        %v988 = vlaneseq
        %v989 = vshrl.u32 %v988, 7
        %v990 = vsub.s32 %v987, %v989
        %v991 = vrot.slane %v977, %v990
        %v992 = vcombine.high %v984, %v984
        %v993 = vcombine.high %v991, %v991
        %v994 = vcombine.high %v842, %v842
        %v996 = vunpack.c.l.s4 1983009808
        %v997 = vunpack.c.0.s8 %v996
        %v998 = vlaneseq
        %v999 = vshrl.u32 %v998, 7
        %v1000 = vsub.s32 %v997, %v999
        %v1001 = vrot.slane %v842, %v1000
        %v1003 = vunpack.c.l.s4 1983009808
        %v1004 = vunpack.c.0.s8 %v1003
        %v1005 = vlaneseq
        %v1006 = vshrl.u32 %v1005, 7
        %v1007 = vsub.s32 %v1004, %v1006
        %v1008 = vrot.slane %v994, %v1007
        %v1009 = vcombine.high %v1001, %v1001
        %v1010 = vcombine.high %v1008, %v1008
        %v1011 = vcombine.high %v843, %v843
        %v1013 = vunpack.c.l.s4 1983009808
        %v1014 = vunpack.c.0.s8 %v1013
        %v1015 = vlaneseq
        %v1016 = vshrl.u32 %v1015, 7
        %v1017 = vsub.s32 %v1014, %v1016
        %v1018 = vrot.slane %v843, %v1017
        %v1020 = vunpack.c.l.s4 1983009808
        %v1021 = vunpack.c.0.s8 %v1020
        %v1022 = vlaneseq
        %v1023 = vshrl.u32 %v1022, 7
        %v1024 = vsub.s32 %v1021, %v1023
        %v1025 = vrot.slane %v1011, %v1024
        %v1026 = vcombine.high %v1018, %v1018
        %v1027 = vcombine.high %v1025, %v1025
        %v1028 = vcombine.high %v844, %v844
        %v1030 = vunpack.c.l.s4 1983009808
        %v1031 = vunpack.c.0.s8 %v1030
        %v1032 = vlaneseq
        %v1033 = vshrl.u32 %v1032, 7
        %v1034 = vsub.s32 %v1031, %v1033
        %v1035 = vrot.slane %v844, %v1034
        %v1037 = vunpack.c.l.s4 1983009808
        %v1038 = vunpack.c.0.s8 %v1037
        %v1039 = vlaneseq
        %v1040 = vshrl.u32 %v1039, 7
        %v1041 = vsub.s32 %v1038, %v1040
        %v1042 = vrot.slane %v1028, %v1041
        %v1043 = vcombine.high %v1035, %v1035
        %v1044 = vcombine.high %v1042, %v1042
        %v1045 = vrot.slane %v984, 1
        %v1046 = vrot.slane %v992, 1
        %v1047 = vrot.slane %v991, 1
        %v1048 = vrot.slane %v993, 1
        %v1049 = vrot.slane %v1001, 1
        %v1050 = vrot.slane %v1009, 1
        %v1051 = vrot.slane %v1008, 1
        %v1052 = vrot.slane %v1010, 1
        %v1053 = vrot.slane %v1018, 1
        %v1054 = vrot.slane %v1026, 1
        %v1055 = vrot.slane %v1025, 1
        %v1056 = vrot.slane %v1027, 1
        %v1057 = vrot.slane %v1035, 1
        %v1058 = vrot.slane %v1043, 1
        %v1059 = vrot.slane %v1042, 1
        %v1060 = vrot.slane %v1044, 1
        %v1093 = vmax.f32 %v941, %v984
        %v1094 = vmax.f32 %v942, %v1045
        %v1095 = vmax.f32 %v943, %v992
        %v1096 = vmax.f32 %v944, %v1046
        %v1097 = vmax.f32 %v945, %v991
        %v1098 = vmax.f32 %v946, %v1047
        %v1099 = vmax.f32 %v947, %v993
        %v1100 = vmax.f32 %v948, %v1048
        %v1101 = vmax.f32 %v949, %v1001
        %v1102 = vmax.f32 %v950, %v1049
        %v1103 = vmax.f32 %v951, %v1009
        %v1104 = vmax.f32 %v952, %v1050
        %v1105 = vmax.f32 %v953, %v1008
        %v1106 = vmax.f32 %v954, %v1051
        %v1107 = vmax.f32 %v955, %v1010
        %v1108 = vmax.f32 %v956, %v1052
        %v1109 = vmax.f32 %v957, %v1018
        %v1110 = vmax.f32 %v958, %v1053
        %v1111 = vmax.f32 %v959, %v1026
        %v1112 = vmax.f32 %v960, %v1054
        %v1113 = vmax.f32 %v961, %v1025
        %v1114 = vmax.f32 %v962, %v1055
        %v1115 = vmax.f32 %v963, %v1027
        %v1116 = vmax.f32 %v964, %v1056
        %v1117 = vmax.f32 %v965, %v1035
        %v1118 = vmax.f32 %v966, %v1057
        %v1119 = vmax.f32 %v967, %v1043
        %v1120 = vmax.f32 %v968, %v1058
        %v1121 = vmax.f32 %v969, %v1042
        %v1122 = vmax.f32 %v970, %v1059
        %v1123 = vmax.f32 %v971, %v1044
        %v1124 = vmax.f32 %v972, %v1060
        %v1157 = vlaneseq
        %v1158 = vshrl.u32 %v1157, 7
        %v1159 = vsub.s32 0, %v1158
        %v1160 = vrot.slane %v1093, %v1159
        %v1161 = vlaneseq
        %v1162 = vshrl.u32 %v1161, 7
        %v1163 = vsub.s32 0, %v1162
        %v1164 = vrot.slane %v1094, %v1163
        %v1165 = vlaneseq
        %v1166 = vshrl.u32 %v1165, 7
        %v1167 = vsub.s32 0, %v1166
        %v1168 = vrot.slane %v1095, %v1167
        %v1169 = vlaneseq
        %v1170 = vshrl.u32 %v1169, 7
        %v1171 = vsub.s32 0, %v1170
        %v1172 = vrot.slane %v1096, %v1171
        %v1173 = vlaneseq
        %v1174 = vshrl.u32 %v1173, 7
        %v1175 = vsub.s32 0, %v1174
        %v1176 = vrot.slane %v1097, %v1175
        %v1177 = vlaneseq
        %v1178 = vshrl.u32 %v1177, 7
        %v1179 = vsub.s32 0, %v1178
        %v1180 = vrot.slane %v1098, %v1179
        %v1181 = vlaneseq
        %v1182 = vshrl.u32 %v1181, 7
        %v1183 = vsub.s32 0, %v1182
        %v1184 = vrot.slane %v1099, %v1183
        %v1185 = vlaneseq
        %v1186 = vshrl.u32 %v1185, 7
        %v1187 = vsub.s32 0, %v1186
        %v1188 = vrot.slane %v1100, %v1187
        %v1189 = vlaneseq
        %v1190 = vshrl.u32 %v1189, 7
        %v1191 = vsub.s32 0, %v1190
        %v1192 = vrot.slane %v1101, %v1191
        %v1193 = vlaneseq
        %v1194 = vshrl.u32 %v1193, 7
        %v1195 = vsub.s32 0, %v1194
        %v1196 = vrot.slane %v1102, %v1195
        %v1197 = vlaneseq
        %v1198 = vshrl.u32 %v1197, 7
        %v1199 = vsub.s32 0, %v1198
        %v1200 = vrot.slane %v1103, %v1199
        %v1201 = vlaneseq
        %v1202 = vshrl.u32 %v1201, 7
        %v1203 = vsub.s32 0, %v1202
        %v1204 = vrot.slane %v1104, %v1203
        %v1205 = vlaneseq
        %v1206 = vshrl.u32 %v1205, 7
        %v1207 = vsub.s32 0, %v1206
        %v1208 = vrot.slane %v1105, %v1207
        %v1209 = vlaneseq
        %v1210 = vshrl.u32 %v1209, 7
        %v1211 = vsub.s32 0, %v1210
        %v1212 = vrot.slane %v1106, %v1211
        %v1213 = vlaneseq
        %v1214 = vshrl.u32 %v1213, 7
        %v1215 = vsub.s32 0, %v1214
        %v1216 = vrot.slane %v1107, %v1215
        %v1217 = vlaneseq
        %v1218 = vshrl.u32 %v1217, 7
        %v1219 = vsub.s32 0, %v1218
        %v1220 = vrot.slane %v1108, %v1219
        %v1221 = vlaneseq
        %v1222 = vshrl.u32 %v1221, 7
        %v1223 = vsub.s32 0, %v1222
        %v1224 = vrot.slane %v1109, %v1223
        %v1225 = vlaneseq
        %v1226 = vshrl.u32 %v1225, 7
        %v1227 = vsub.s32 0, %v1226
        %v1228 = vrot.slane %v1110, %v1227
        %v1229 = vlaneseq
        %v1230 = vshrl.u32 %v1229, 7
        %v1231 = vsub.s32 0, %v1230
        %v1232 = vrot.slane %v1111, %v1231
        %v1233 = vlaneseq
        %v1234 = vshrl.u32 %v1233, 7
        %v1235 = vsub.s32 0, %v1234
        %v1236 = vrot.slane %v1112, %v1235
        %v1237 = vlaneseq
        %v1238 = vshrl.u32 %v1237, 7
        %v1239 = vsub.s32 0, %v1238
        %v1240 = vrot.slane %v1113, %v1239
        %v1241 = vlaneseq
        %v1242 = vshrl.u32 %v1241, 7
        %v1243 = vsub.s32 0, %v1242
        %v1244 = vrot.slane %v1114, %v1243
        %v1245 = vlaneseq
        %v1246 = vshrl.u32 %v1245, 7
        %v1247 = vsub.s32 0, %v1246
        %v1248 = vrot.slane %v1115, %v1247
        %v1249 = vlaneseq
        %v1250 = vshrl.u32 %v1249, 7
        %v1251 = vsub.s32 0, %v1250
        %v1252 = vrot.slane %v1116, %v1251
        %v1253 = vlaneseq
        %v1254 = vshrl.u32 %v1253, 7
        %v1255 = vsub.s32 0, %v1254
        %v1256 = vrot.slane %v1117, %v1255
        %v1257 = vlaneseq
        %v1258 = vshrl.u32 %v1257, 7
        %v1259 = vsub.s32 0, %v1258
        %v1260 = vrot.slane %v1118, %v1259
        %v1261 = vlaneseq
        %v1262 = vshrl.u32 %v1261, 7
        %v1263 = vsub.s32 0, %v1262
        %v1264 = vrot.slane %v1119, %v1263
        %v1265 = vlaneseq
        %v1266 = vshrl.u32 %v1265, 7
        %v1267 = vsub.s32 0, %v1266
        %v1268 = vrot.slane %v1120, %v1267
        %v1269 = vlaneseq
        %v1270 = vshrl.u32 %v1269, 7
        %v1271 = vsub.s32 0, %v1270
        %v1272 = vrot.slane %v1121, %v1271
        %v1273 = vlaneseq
        %v1274 = vshrl.u32 %v1273, 7
        %v1275 = vsub.s32 0, %v1274
        %v1276 = vrot.slane %v1122, %v1275
        %v1277 = vlaneseq
        %v1278 = vshrl.u32 %v1277, 7
        %v1279 = vsub.s32 0, %v1278
        %v1280 = vrot.slane %v1123, %v1279
        %v1281 = vlaneseq
        %v1282 = vshrl.u32 %v1281, 7
        %v1283 = vsub.s32 0, %v1282
        %v1284 = vrot.slane %v1124, %v1283
        %vm1285 = vcmask 1041409
        %v1286 = vsel %vm1285, %v1164, %v1160
        %v1287 = vsel %vm806, %v1168, %v1286
        %v1288 = vsel %vm808, %v1172, %v1287
        %v1289 = vsel %vm810, %v1176, %v1288
        %v1290 = vsel %vm812, %v1180, %v1289
        %v1291 = vsel %vm814, %v1184, %v1290
        %v1292 = vsel %vm816, %v1188, %v1291
        %v1293 = vsel %vm1285, %v1196, %v1192
        %v1294 = vsel %vm806, %v1200, %v1293
        %v1295 = vsel %vm808, %v1204, %v1294
        %v1296 = vsel %vm810, %v1208, %v1295
        %v1297 = vsel %vm812, %v1212, %v1296
        %v1298 = vsel %vm814, %v1216, %v1297
        %v1299 = vsel %vm816, %v1220, %v1298
        %v1300 = vsel %vm1285, %v1228, %v1224
        %v1301 = vsel %vm806, %v1232, %v1300
        %v1302 = vsel %vm808, %v1236, %v1301
        %v1303 = vsel %vm810, %v1240, %v1302
        %v1304 = vsel %vm812, %v1244, %v1303
        %v1305 = vsel %vm814, %v1248, %v1304
        %v1306 = vsel %vm816, %v1252, %v1305
        %v1307 = vsel %vm1285, %v1260, %v1256
        %v1308 = vsel %vm806, %v1264, %v1307
        %v1309 = vsel %vm808, %v1268, %v1308
        %v1310 = vsel %vm810, %v1272, %v1309
        %v1311 = vsel %vm812, %v1276, %v1310
        %v1312 = vsel %vm814, %v1280, %v1311
        %v1313 = vsel %vm816, %v1284, %v1312
        %1314 = vrot.lane.b32.xlu0 %v1292, 72
        %v1315 = vpop.permute.xlu0 %1314
        %1316 = vrot.lane.b32.xlu0 %v1299, 72
        %v1317 = vpop.permute.xlu0 %1316
        %1318 = vrot.lane.b32.xlu0 %v1306, 72
        %v1319 = vpop.permute.xlu0 %1318
        %1320 = vrot.lane.b32.xlu0 %v1313, 72
        %v1321 = vpop.permute.xlu0 %1320
        %vm1326 = vcmask 64512
        %v1327 = vsel %vm1326, -inf, %v1315
        %v1328 = vsel %vm1326, -inf, %v1317
        %v1329 = vsel %vm1326, -inf, %v1319
        %v1330 = vsel %vm1326, -inf, %v1321
        %1331 = vrot.lane.b32.xlu0 %v1093, 64
        %v1332 = vpop.permute.xlu0 %1331
        %1333 = vrot.lane.b32.xlu0 %v1094, 64
        %v1334 = vpop.permute.xlu0 %1333
        %1335 = vrot.lane.b32.xlu0 %v1095, 64
        %v1336 = vpop.permute.xlu0 %1335
        %1337 = vrot.lane.b32.xlu0 %v1096, 64
        %v1338 = vpop.permute.xlu0 %1337
        %1339 = vrot.lane.b32.xlu0 %v1097, 64
        %v1340 = vpop.permute.xlu0 %1339
        %1341 = vrot.lane.b32.xlu0 %v1098, 64
        %v1342 = vpop.permute.xlu0 %1341
        %1343 = vrot.lane.b32.xlu0 %v1099, 64
        %v1344 = vpop.permute.xlu0 %1343
        %1345 = vrot.lane.b32.xlu0 %v1100, 64
        %v1346 = vpop.permute.xlu0 %1345
        %1347 = vrot.lane.b32.xlu0 %v1101, 64
        %v1348 = vpop.permute.xlu0 %1347
        %1349 = vrot.lane.b32.xlu0 %v1102, 64
        %v1350 = vpop.permute.xlu0 %1349
        %1351 = vrot.lane.b32.xlu0 %v1103, 64
        %v1352 = vpop.permute.xlu0 %1351
        %1353 = vrot.lane.b32.xlu0 %v1104, 64
        %v1354 = vpop.permute.xlu0 %1353
        %1355 = vrot.lane.b32.xlu0 %v1105, 64
        %v1356 = vpop.permute.xlu0 %1355
        %1357 = vrot.lane.b32.xlu0 %v1106, 64
        %v1358 = vpop.permute.xlu0 %1357
        %1359 = vrot.lane.b32.xlu0 %v1107, 64
        %v1360 = vpop.permute.xlu0 %1359
        %1361 = vrot.lane.b32.xlu0 %v1108, 64
        %v1362 = vpop.permute.xlu0 %1361
        %1363 = vrot.lane.b32.xlu0 %v1109, 64
        %v1364 = vpop.permute.xlu0 %1363
        %1365 = vrot.lane.b32.xlu0 %v1110, 64
        %v1366 = vpop.permute.xlu0 %1365
        %1367 = vrot.lane.b32.xlu0 %v1111, 64
        %v1368 = vpop.permute.xlu0 %1367
        %1369 = vrot.lane.b32.xlu0 %v1112, 64
        %v1370 = vpop.permute.xlu0 %1369
        %1371 = vrot.lane.b32.xlu0 %v1113, 64
        %v1372 = vpop.permute.xlu0 %1371
        %1373 = vrot.lane.b32.xlu0 %v1114, 64
        %v1374 = vpop.permute.xlu0 %1373
        %1375 = vrot.lane.b32.xlu0 %v1115, 64
        %v1376 = vpop.permute.xlu0 %1375
        %1377 = vrot.lane.b32.xlu0 %v1116, 64
        %v1378 = vpop.permute.xlu0 %1377
        %1379 = vrot.lane.b32.xlu0 %v1117, 64
        %v1380 = vpop.permute.xlu0 %1379
        %1381 = vrot.lane.b32.xlu0 %v1118, 64
        %v1382 = vpop.permute.xlu0 %1381
        %1383 = vrot.lane.b32.xlu0 %v1119, 64
        %v1384 = vpop.permute.xlu0 %1383
        %1385 = vrot.lane.b32.xlu0 %v1120, 64
        %v1386 = vpop.permute.xlu0 %1385
        %1387 = vrot.lane.b32.xlu0 %v1121, 64
        %v1388 = vpop.permute.xlu0 %1387
        %1389 = vrot.lane.b32.xlu0 %v1122, 64
        %v1390 = vpop.permute.xlu0 %1389
        %1391 = vrot.lane.b32.xlu0 %v1123, 64
        %v1392 = vpop.permute.xlu0 %1391
        %1393 = vrot.lane.b32.xlu0 %v1124, 64
        %v1394 = vpop.permute.xlu0 %1393
        %v1427 = vmax.f32 %v1093, %v1332
        %v1428 = vmax.f32 %v1094, %v1334
        %v1429 = vmax.f32 %v1095, %v1336
        %v1430 = vmax.f32 %v1096, %v1338
        %v1431 = vmax.f32 %v1097, %v1340
        %v1432 = vmax.f32 %v1098, %v1342
        %v1433 = vmax.f32 %v1099, %v1344
        %v1434 = vmax.f32 %v1100, %v1346
        %v1435 = vmax.f32 %v1101, %v1348
        %v1436 = vmax.f32 %v1102, %v1350
        %v1437 = vmax.f32 %v1103, %v1352
        %v1438 = vmax.f32 %v1104, %v1354
        %v1439 = vmax.f32 %v1105, %v1356
        %v1440 = vmax.f32 %v1106, %v1358
        %v1441 = vmax.f32 %v1107, %v1360
        %v1442 = vmax.f32 %v1108, %v1362
        %v1443 = vmax.f32 %v1109, %v1364
        %v1444 = vmax.f32 %v1110, %v1366
        %v1445 = vmax.f32 %v1111, %v1368
        %v1446 = vmax.f32 %v1112, %v1370
        %v1447 = vmax.f32 %v1113, %v1372
        %v1448 = vmax.f32 %v1114, %v1374
        %v1449 = vmax.f32 %v1115, %v1376
        %v1450 = vmax.f32 %v1116, %v1378
        %v1451 = vmax.f32 %v1117, %v1380
        %v1452 = vmax.f32 %v1118, %v1382
        %v1453 = vmax.f32 %v1119, %v1384
        %v1454 = vmax.f32 %v1120, %v1386
        %v1455 = vmax.f32 %v1121, %v1388
        %v1456 = vmax.f32 %v1122, %v1390
        %v1457 = vmax.f32 %v1123, %v1392
        %v1458 = vmax.f32 %v1124, %v1394
        %v1463 = vcombine.high %v1327, %v1327
        %v1465 = vunpack.c.l.s4 1983009808
        %v1466 = vunpack.c.0.s8 %v1465
        %v1467 = vlaneseq
        %v1468 = vshrl.u32 %v1467, 7
        %v1469 = vsub.s32 %v1466, %v1468
        %v1470 = vrot.slane %v1327, %v1469
        %v1472 = vunpack.c.l.s4 1983009808
        %v1473 = vunpack.c.0.s8 %v1472
        %v1474 = vlaneseq
        %v1475 = vshrl.u32 %v1474, 7
        %v1476 = vsub.s32 %v1473, %v1475
        %v1477 = vrot.slane %v1463, %v1476
        %v1478 = vcombine.high %v1470, %v1470
        %v1479 = vcombine.high %v1477, %v1477
        %v1480 = vcombine.high %v1328, %v1328
        %v1482 = vunpack.c.l.s4 1983009808
        %v1483 = vunpack.c.0.s8 %v1482
        %v1484 = vlaneseq
        %v1485 = vshrl.u32 %v1484, 7
        %v1486 = vsub.s32 %v1483, %v1485
        %v1487 = vrot.slane %v1328, %v1486
        %v1489 = vunpack.c.l.s4 1983009808
        %v1490 = vunpack.c.0.s8 %v1489
        %v1491 = vlaneseq
        %v1492 = vshrl.u32 %v1491, 7
        %v1493 = vsub.s32 %v1490, %v1492
        %v1494 = vrot.slane %v1480, %v1493
        %v1495 = vcombine.high %v1487, %v1487
        %v1496 = vcombine.high %v1494, %v1494
        %v1497 = vcombine.high %v1329, %v1329
        %v1499 = vunpack.c.l.s4 1983009808
        %v1500 = vunpack.c.0.s8 %v1499
        %v1501 = vlaneseq
        %v1502 = vshrl.u32 %v1501, 7
        %v1503 = vsub.s32 %v1500, %v1502
        %v1504 = vrot.slane %v1329, %v1503
        %v1506 = vunpack.c.l.s4 1983009808
        %v1507 = vunpack.c.0.s8 %v1506
        %v1508 = vlaneseq
        %v1509 = vshrl.u32 %v1508, 7
        %v1510 = vsub.s32 %v1507, %v1509
        %v1511 = vrot.slane %v1497, %v1510
        %v1512 = vcombine.high %v1504, %v1504
        %v1513 = vcombine.high %v1511, %v1511
        %v1514 = vcombine.high %v1330, %v1330
        %v1516 = vunpack.c.l.s4 1983009808
        %v1517 = vunpack.c.0.s8 %v1516
        %v1518 = vlaneseq
        %v1519 = vshrl.u32 %v1518, 7
        %v1520 = vsub.s32 %v1517, %v1519
        %v1521 = vrot.slane %v1330, %v1520
        %v1523 = vunpack.c.l.s4 1983009808
        %v1524 = vunpack.c.0.s8 %v1523
        %v1525 = vlaneseq
        %v1526 = vshrl.u32 %v1525, 7
        %v1527 = vsub.s32 %v1524, %v1526
        %v1528 = vrot.slane %v1514, %v1527
        %v1529 = vcombine.high %v1521, %v1521
        %v1530 = vcombine.high %v1528, %v1528
        %v1531 = vrot.slane %v1470, 1
        %v1532 = vrot.slane %v1478, 1
        %v1533 = vrot.slane %v1477, 1
        %v1534 = vrot.slane %v1479, 1
        %v1535 = vrot.slane %v1487, 1
        %v1536 = vrot.slane %v1495, 1
        %v1537 = vrot.slane %v1494, 1
        %v1538 = vrot.slane %v1496, 1
        %v1539 = vrot.slane %v1504, 1
        %v1540 = vrot.slane %v1512, 1
        %v1541 = vrot.slane %v1511, 1
        %v1542 = vrot.slane %v1513, 1
        %v1543 = vrot.slane %v1521, 1
        %v1544 = vrot.slane %v1529, 1
        %v1545 = vrot.slane %v1528, 1
        %v1546 = vrot.slane %v1530, 1
        %v1579 = vmax.f32 %v1427, %v1470
        %v1580 = vmax.f32 %v1428, %v1531
        %v1581 = vmax.f32 %v1429, %v1478
        %v1582 = vmax.f32 %v1430, %v1532
        %v1583 = vmax.f32 %v1431, %v1477
        %v1584 = vmax.f32 %v1432, %v1533
        %v1585 = vmax.f32 %v1433, %v1479
        %v1586 = vmax.f32 %v1434, %v1534
        %v1587 = vmax.f32 %v1435, %v1487
        %v1588 = vmax.f32 %v1436, %v1535
        %v1589 = vmax.f32 %v1437, %v1495
        %v1590 = vmax.f32 %v1438, %v1536
        %v1591 = vmax.f32 %v1439, %v1494
        %v1592 = vmax.f32 %v1440, %v1537
        %v1593 = vmax.f32 %v1441, %v1496
        %v1594 = vmax.f32 %v1442, %v1538
        %v1595 = vmax.f32 %v1443, %v1504
        %v1596 = vmax.f32 %v1444, %v1539
        %v1597 = vmax.f32 %v1445, %v1512
        %v1598 = vmax.f32 %v1446, %v1540
        %v1599 = vmax.f32 %v1447, %v1511
        %v1600 = vmax.f32 %v1448, %v1541
        %v1601 = vmax.f32 %v1449, %v1513
        %v1602 = vmax.f32 %v1450, %v1542
        %v1603 = vmax.f32 %v1451, %v1521
        %v1604 = vmax.f32 %v1452, %v1543
        %v1605 = vmax.f32 %v1453, %v1529
        %v1606 = vmax.f32 %v1454, %v1544
        %v1607 = vmax.f32 %v1455, %v1528
        %v1608 = vmax.f32 %v1456, %v1545
        %v1609 = vmax.f32 %v1457, %v1530
        %v1610 = vmax.f32 %v1458, %v1546
        %v1611 = vmax.f32 %v1579, 0.0
        %v1612 = vmax.f32 %v1580, 0.0
        %v1613 = vmax.f32 %v1581, 0.0
        %v1614 = vmax.f32 %v1582, 0.0
        %v1615 = vmax.f32 %v1583, 0.0
        %v1616 = vmax.f32 %v1584, 0.0
        %v1617 = vmax.f32 %v1585, 0.0
        %v1618 = vmax.f32 %v1586, 0.0
        %v1619 = vmax.f32 %v1587, 0.0
        %v1620 = vmax.f32 %v1588, 0.0
        %v1621 = vmax.f32 %v1589, 0.0
        %v1622 = vmax.f32 %v1590, 0.0
        %v1623 = vmax.f32 %v1591, 0.0
        %v1624 = vmax.f32 %v1592, 0.0
        %v1625 = vmax.f32 %v1593, 0.0
        %v1626 = vmax.f32 %v1594, 0.0
        %v1627 = vmax.f32 %v1595, 0.0
        %v1628 = vmax.f32 %v1596, 0.0
        %v1629 = vmax.f32 %v1597, 0.0
        %v1630 = vmax.f32 %v1598, 0.0
        %v1631 = vmax.f32 %v1599, 0.0
        %v1632 = vmax.f32 %v1600, 0.0
        %v1633 = vmax.f32 %v1601, 0.0
        %v1634 = vmax.f32 %v1602, 0.0
        %v1635 = vmax.f32 %v1603, 0.0
        %v1636 = vmax.f32 %v1604, 0.0
        %v1637 = vmax.f32 %v1605, 0.0
        %v1638 = vmax.f32 %v1606, 0.0
        %v1639 = vmax.f32 %v1607, 0.0
        %v1640 = vmax.f32 %v1608, 0.0
        %v1641 = vmax.f32 %v1609, 0.0
        %v1642 = vmax.f32 %v1610, 0.0
        %v1643 = vpack.c.bf16 %v1611, %v1611
        %v1644 = vpack.c.bf16 %v1612, %v1612
        %v1645 = vpack.c.bf16 %v1613, %v1613
        %v1646 = vpack.c.bf16 %v1614, %v1614
        %v1647 = vpack.c.bf16 %v1615, %v1615
        %v1648 = vpack.c.bf16 %v1616, %v1616
        %v1649 = vpack.c.bf16 %v1617, %v1617
        %v1650 = vpack.c.bf16 %v1618, %v1618
        %v1651 = vpack.c.bf16 %v1619, %v1619
        %v1652 = vpack.c.bf16 %v1620, %v1620
        %v1653 = vpack.c.bf16 %v1621, %v1621
        %v1654 = vpack.c.bf16 %v1622, %v1622
        %v1655 = vpack.c.bf16 %v1623, %v1623
        %v1656 = vpack.c.bf16 %v1624, %v1624
        %v1657 = vpack.c.bf16 %v1625, %v1625
        %v1658 = vpack.c.bf16 %v1626, %v1626
        %v1659 = vpack.c.bf16 %v1627, %v1627
        %v1660 = vpack.c.bf16 %v1628, %v1628
        %v1661 = vpack.c.bf16 %v1629, %v1629
        %v1662 = vpack.c.bf16 %v1630, %v1630
        %v1663 = vpack.c.bf16 %v1631, %v1631
        %v1664 = vpack.c.bf16 %v1632, %v1632
        %v1665 = vpack.c.bf16 %v1633, %v1633
        %v1666 = vpack.c.bf16 %v1634, %v1634
        %v1667 = vpack.c.bf16 %v1635, %v1635
        %v1668 = vpack.c.bf16 %v1636, %v1636
        %v1669 = vpack.c.bf16 %v1637, %v1637
        %v1670 = vpack.c.bf16 %v1638, %v1638
        %v1671 = vpack.c.bf16 %v1639, %v1639
        %v1672 = vpack.c.bf16 %v1640, %v1640
        %v1673 = vpack.c.bf16 %v1641, %v1641
        %v1674 = vpack.c.bf16 %v1642, %v1642
        %v1703 = vunpack.c.l.b16 %v1643
        %v1704 = vunpack.c.l.b16 %v1644
        %v1705 = vunpack.c.l.b16 %v1645
        %v1706 = vunpack.c.l.b16 %v1646
        %v1707 = vunpack.c.l.b16 %v1647
        %v1708 = vunpack.c.l.b16 %v1648
        %v1709 = vunpack.c.l.b16 %v1649
        %v1710 = vunpack.c.l.b16 %v1651
        %v1711 = vunpack.c.l.b16 %v1652
        %v1712 = vunpack.c.l.b16 %v1653
        %v1713 = vunpack.c.l.b16 %v1654
        %v1714 = vunpack.c.l.b16 %v1655
        %v1715 = vunpack.c.l.b16 %v1656
        %v1716 = vunpack.c.l.b16 %v1657
        %v1717 = vunpack.c.l.b16 %v1659
        %v1718 = vunpack.c.l.b16 %v1660
        %v1719 = vunpack.c.l.b16 %v1661
        %v1720 = vunpack.c.l.b16 %v1662
        %v1721 = vunpack.c.l.b16 %v1663
        %v1722 = vunpack.c.l.b16 %v1664
        %v1723 = vunpack.c.l.b16 %v1665
        %v1724 = vunpack.c.l.b16 %v1667
        %v1725 = vunpack.c.l.b16 %v1668
        %v1726 = vunpack.c.l.b16 %v1669
        %v1727 = vunpack.c.l.b16 %v1670
        %v1728 = vunpack.c.l.b16 %v1671
        %v1729 = vunpack.c.l.b16 %v1672
        %v1730 = vunpack.c.l.b16 %v1673
        %v1731 = vrot.slane %v1703, 7
        %v1732 = vrot.slane %v1704, 6
        %v1733 = vsel %vm806, %v1732, %v1731
        %v1734 = vrot.slane %v1705, 5
        %v1735 = vsel %vm808, %v1734, %v1733
        %v1736 = vrot.slane %v1706, 4
        %v1737 = vsel %vm810, %v1736, %v1735
        %v1738 = vrot.slane %v1707, 3
        %v1739 = vsel %vm812, %v1738, %v1737
        %v1740 = vrot.slane %v1708, 2
        %v1741 = vsel %vm814, %v1740, %v1739
        %v1742 = vrot.slane %v1709, 1
        %v1743 = vsel %vm816, %v1742, %v1741
        %v1744 = vrot.slane %v1710, 7
        %v1745 = vrot.slane %v1711, 6
        %v1746 = vsel %vm806, %v1745, %v1744
        %v1747 = vrot.slane %v1712, 5
        %v1748 = vsel %vm808, %v1747, %v1746
        %v1749 = vrot.slane %v1713, 4
        %v1750 = vsel %vm810, %v1749, %v1748
        %v1751 = vrot.slane %v1714, 3
        %v1752 = vsel %vm812, %v1751, %v1750
        %v1753 = vrot.slane %v1715, 2
        %v1754 = vsel %vm814, %v1753, %v1752
        %v1755 = vrot.slane %v1716, 1
        %v1756 = vsel %vm816, %v1755, %v1754
        %v1757 = vrot.slane %v1717, 7
        %v1758 = vrot.slane %v1718, 6
        %v1759 = vsel %vm806, %v1758, %v1757
        %v1760 = vrot.slane %v1719, 5
        %v1761 = vsel %vm808, %v1760, %v1759
        %v1762 = vrot.slane %v1720, 4
        %v1763 = vsel %vm810, %v1762, %v1761
        %v1764 = vrot.slane %v1721, 3
        %v1765 = vsel %vm812, %v1764, %v1763
        %v1766 = vrot.slane %v1722, 2
        %v1767 = vsel %vm814, %v1766, %v1765
        %v1768 = vrot.slane %v1723, 1
        %v1769 = vsel %vm816, %v1768, %v1767
        %v1770 = vrot.slane %v1724, 7
        %v1771 = vrot.slane %v1725, 6
        %v1772 = vsel %vm806, %v1771, %v1770
        %v1773 = vrot.slane %v1726, 5
        %v1774 = vsel %vm808, %v1773, %v1772
        %v1775 = vrot.slane %v1727, 4
        %v1776 = vsel %vm810, %v1775, %v1774
        %v1777 = vrot.slane %v1728, 3
        %v1778 = vsel %vm812, %v1777, %v1776
        %v1779 = vrot.slane %v1729, 2
        %v1780 = vsel %vm814, %v1779, %v1778
        %v1781 = vrot.slane %v1730, 1
        %v1782 = vsel %vm816, %v1781, %v1780
        %v1783 = vpack.c.b16 %v1743, %v1743
        %v1784 = vpack.c.b16 %v1756, %v1756
        %v1785 = vpack.c.b16 %v1769, %v1769
        %v1786 = vpack.c.b16 %v1782, %v1782
        %v1791 = vsel %vm289, 0, %v1783
        %v1792 = vsel %vm289, 0, %v1784
        %v1793 = vsel %vm289, 0, %v1785
        %v1794 = vsel %vm289, 0, %v1786
        %v1799 = vunpack.c.l.b16 %v1650
        %v1800 = vunpack.c.l.b16 %v1658
        %v1801 = vunpack.c.l.b16 %v1666
        %v1802 = vunpack.c.l.b16 %v1674
        %v1803 = vrot.slane %v1705, 7
        %v1804 = vsel %vm1285, %v1803, %v1704
        %v1805 = vrot.slane %v1706, 6
        %v1806 = vsel %vm806, %v1805, %v1804
        %v1807 = vrot.slane %v1707, 5
        %v1808 = vsel %vm808, %v1807, %v1806
        %v1809 = vrot.slane %v1708, 4
        %v1810 = vsel %vm810, %v1809, %v1808
        %v1811 = vrot.slane %v1709, 3
        %v1812 = vsel %vm812, %v1811, %v1810
        %v1813 = vrot.slane %v1799, 2
        %v1814 = vsel %vm814, %v1813, %v1812
        %v1815 = vrot.slane %v1712, 7
        %v1816 = vsel %vm1285, %v1815, %v1711
        %v1817 = vrot.slane %v1713, 6
        %v1818 = vsel %vm806, %v1817, %v1816
        %v1819 = vrot.slane %v1714, 5
        %v1820 = vsel %vm808, %v1819, %v1818
        %v1821 = vrot.slane %v1715, 4
        %v1822 = vsel %vm810, %v1821, %v1820
        %v1823 = vrot.slane %v1716, 3
        %v1824 = vsel %vm812, %v1823, %v1822
        %v1825 = vrot.slane %v1800, 2
        %v1826 = vsel %vm814, %v1825, %v1824
        %v1827 = vrot.slane %v1719, 7
        %v1828 = vsel %vm1285, %v1827, %v1718
        %v1829 = vrot.slane %v1720, 6
        %v1830 = vsel %vm806, %v1829, %v1828
        %v1831 = vrot.slane %v1721, 5
        %v1832 = vsel %vm808, %v1831, %v1830
        %v1833 = vrot.slane %v1722, 4
        %v1834 = vsel %vm810, %v1833, %v1832
        %v1835 = vrot.slane %v1723, 3
        %v1836 = vsel %vm812, %v1835, %v1834
        %v1837 = vrot.slane %v1801, 2
        %v1838 = vsel %vm814, %v1837, %v1836
        %v1839 = vrot.slane %v1726, 7
        %v1840 = vsel %vm1285, %v1839, %v1725
        %v1841 = vrot.slane %v1727, 6
        %v1842 = vsel %vm806, %v1841, %v1840
        %v1843 = vrot.slane %v1728, 5
        %v1844 = vsel %vm808, %v1843, %v1842
        %v1845 = vrot.slane %v1729, 4
        %v1846 = vsel %vm810, %v1845, %v1844
        %v1847 = vrot.slane %v1730, 3
        %v1848 = vsel %vm812, %v1847, %v1846
        %v1849 = vrot.slane %v1802, 2
        %v1850 = vsel %vm814, %v1849, %v1848
        %v1851 = vpack.c.b16 %v1814, %v1814
        %v1852 = vpack.c.b16 %v1826, %v1826
        %v1853 = vpack.c.b16 %v1838, %v1838
        %v1854 = vpack.c.b16 %v1850, %v1850
        %vm1859 = vcmask 1043456
        %vm1860 = vsmask.f32 3328
        %vm1861 = vmand %vm1859, %vm1860
        %v1862 = vsel %vm1861, %v1851, 0
        %v1863 = vsel %vm1861, %v1852, 0
        %v1864 = vsel %vm1861, %v1853, 0
        %v1865 = vsel %vm1861, %v1854, 0
        %v1866 = vrot.slane %v1704, 7
        %v1867 = vsel %vm1285, %v1866, %v1703
        %v1868 = vrot.slane %v1705, 6
        %v1869 = vsel %vm806, %v1868, %v1867
        %v1870 = vrot.slane %v1706, 5
        %v1871 = vsel %vm808, %v1870, %v1869
        %v1872 = vrot.slane %v1707, 4
        %v1873 = vsel %vm810, %v1872, %v1871
        %v1874 = vrot.slane %v1708, 3
        %v1875 = vsel %vm812, %v1874, %v1873
        %v1876 = vrot.slane %v1709, 2
        %v1877 = vsel %vm814, %v1876, %v1875
        %v1878 = vrot.slane %v1799, 1
        %v1879 = vsel %vm816, %v1878, %v1877
        %v1880 = vrot.slane %v1711, 7
        %v1881 = vsel %vm1285, %v1880, %v1710
        %v1882 = vrot.slane %v1712, 6
        %v1883 = vsel %vm806, %v1882, %v1881
        %v1884 = vrot.slane %v1713, 5
        %v1885 = vsel %vm808, %v1884, %v1883
        %v1886 = vrot.slane %v1714, 4
        %v1887 = vsel %vm810, %v1886, %v1885
        %v1888 = vrot.slane %v1715, 3
        %v1889 = vsel %vm812, %v1888, %v1887
        %v1890 = vrot.slane %v1716, 2
        %v1891 = vsel %vm814, %v1890, %v1889
        %v1892 = vrot.slane %v1800, 1
        %v1893 = vsel %vm816, %v1892, %v1891
        %v1894 = vrot.slane %v1718, 7
        %v1895 = vsel %vm1285, %v1894, %v1717
        %v1896 = vrot.slane %v1719, 6
        %v1897 = vsel %vm806, %v1896, %v1895
        %v1898 = vrot.slane %v1720, 5
        %v1899 = vsel %vm808, %v1898, %v1897
        %v1900 = vrot.slane %v1721, 4
        %v1901 = vsel %vm810, %v1900, %v1899
        %v1902 = vrot.slane %v1722, 3
        %v1903 = vsel %vm812, %v1902, %v1901
        %v1904 = vrot.slane %v1723, 2
        %v1905 = vsel %vm814, %v1904, %v1903
        %v1906 = vrot.slane %v1801, 1
        %v1907 = vsel %vm816, %v1906, %v1905
        %v1908 = vrot.slane %v1725, 7
        %v1909 = vsel %vm1285, %v1908, %v1724
        %v1910 = vrot.slane %v1726, 6
        %v1911 = vsel %vm806, %v1910, %v1909
        %v1912 = vrot.slane %v1727, 5
        %v1913 = vsel %vm808, %v1912, %v1911
        %v1914 = vrot.slane %v1728, 4
        %v1915 = vsel %vm810, %v1914, %v1913
        %v1916 = vrot.slane %v1729, 3
        %v1917 = vsel %vm812, %v1916, %v1915
        %v1918 = vrot.slane %v1730, 2
        %v1919 = vsel %vm814, %v1918, %v1917
        %v1920 = vrot.slane %v1802, 1
        %v1921 = vsel %vm816, %v1920, %v1919
        %v1922 = vpack.c.b16 %v1879, %v1879
        %v1923 = vpack.c.b16 %v1893, %v1893
        %v1924 = vpack.c.b16 %v1907, %v1907
        %v1925 = vpack.c.b16 %v1921, %v1921
        %1926 = vrot.lane.b32.xlu0 %v1922, 64
        %v1927 = vpop.permute.xlu0 %1926
        %1928 = vrot.lane.b32.xlu0 %v1923, 64
        %v1929 = vpop.permute.xlu0 %1928
        %1930 = vrot.lane.b32.xlu0 %v1924, 64
        %v1931 = vpop.permute.xlu0 %1930
        %1932 = vrot.lane.b32.xlu0 %v1925, 64
        %v1933 = vpop.permute.xlu0 %1932
        %v1936 = vsel %vm321, %v1791, %v1927
        %v1939 = vsel %vm321, %v1792, %v1929
        %v1942 = vsel %vm321, %v1793, %v1931
        %v1945 = vsel %vm321, %v1794, %v1933
        %v1954 = vunpack.c.l.b16 %v1936
        %v1955 = vunpack.c.l.b16 %v1862
        %v1956 = vunpack.c.l.b16 %v1939
        %v1957 = vunpack.c.l.b16 %v1863
        %v1958 = vunpack.c.l.b16 %v1942
        %v1959 = vunpack.c.l.b16 %v1864
        %v1960 = vunpack.c.l.b16 %v1945
        %v1961 = vunpack.c.l.b16 %v1865
        %v1962 = vld [vmem:[%s3] sm:$0xf]
        %v1963 = vld [vmem:[%s3 + $0x4] sm:$0xf]
        %v1964 = vld [vmem:[%s3 + $0x8] sm:$0xf]
        %v1965 = vld [vmem:[%s3 + $0xc] sm:$0xf]
        %v1966 = vld [vmem:[%s3 + $0x10] sm:$0xf]
        %v1967 = vld [vmem:[%s3 + $0x14] sm:$0xf]
        %v1968 = vld [vmem:[%s3 + $0x18] sm:$0xf]
        %v1969 = vld [vmem:[%s3 + $0x1c] sm:$0xf]
        %v1970 = vld [vmem:[%s3 + $0x20] sm:$0xf]
        %v1971 = vld [vmem:[%s3 + $0x24] sm:$0xf]
        %v1972 = vld [vmem:[%s3 + $0x28] sm:$0xf]
        %v1973 = vld [vmem:[%s3 + $0x2c] sm:$0xf]
        %v1974 = vld [vmem:[%s3 + $0x30] sm:$0xf]
        %v1975 = vld [vmem:[%s3 + $0x34] sm:$0xf]
        %v1976 = vld [vmem:[%s3 + $0x38] sm:$0xf]
        %v1977 = vld [vmem:[%s3 + $0x3c] sm:$0xf]
        %v1978 = vld [vmem:[%s3 + $0x40] sm:$0xf]
        %v1979 = vld [vmem:[%s3 + $0x44] sm:$0xf]
        %v1980 = vld [vmem:[%s3 + $0x48] sm:$0xf]
        %v1981 = vld [vmem:[%s3 + $0x4c] sm:$0xf]
        %v1982 = vld [vmem:[%s3 + $0x50] sm:$0xf]
        %v1983 = vld [vmem:[%s3 + $0x54] sm:$0xf]
        %v1984 = vld [vmem:[%s3 + $0x58] sm:$0xf]
        %v1985 = vld [vmem:[%s3 + $0x5c] sm:$0xf]
        %v1986 = vld [vmem:[%s4] sm:$0x1]
        %v1988 = vlaneseq
        %v1989 = vshrl.u32 %v1988, 7
        %v1990 = vsub.s32 0, %v1989
        %v1991 = vrot.slane %v1986, %v1990
        %v1993 = vpack.c.b16 %v1956, %v1954
        %v1994 = vpack.c.b16 %v1957, %v1955
        %v1995 = vpack.c.b16 %v1960, %v1958
        %v1996 = vpack.c.b16 %v1961, %v1959
        %v2023 = vunpack.c.l.b16 %v1962
        %v2024 = vunpack.c.l.b16 %v1963
        %v2025 = vunpack.c.l.b16 %v1964
        %v2026 = vunpack.c.l.b16 %v1965
        %v2027 = vunpack.c.l.b16 %v1966
        %v2028 = vunpack.c.l.b16 %v1967
        %v2029 = vunpack.c.l.b16 %v1968
        %v2030 = vunpack.c.l.b16 %v1969
        %v2031 = vunpack.c.l.b16 %v1970
        %v2032 = vunpack.c.l.b16 %v1971
        %v2033 = vunpack.c.l.b16 %v1972
        %v2034 = vunpack.c.l.b16 %v1973
        %v2035 = vunpack.c.l.b16 %v1974
        %v2036 = vunpack.c.l.b16 %v1975
        %v2037 = vunpack.c.l.b16 %v1976
        %v2038 = vunpack.c.l.b16 %v1977
        %v2039 = vunpack.c.l.b16 %v1978
        %v2040 = vunpack.c.l.b16 %v1979
        %v2041 = vunpack.c.l.b16 %v1980
        %v2042 = vunpack.c.l.b16 %v1981
        %v2043 = vunpack.c.l.b16 %v1982
        %v2044 = vunpack.c.l.b16 %v1983
        %v2045 = vunpack.c.l.b16 %v1984
        %v2046 = vunpack.c.l.b16 %v1985
        %v2047 = vpack.c.b16 %v2024, %v2023
        %v2048 = vpack.c.b16 %v2026, %v2025
        %v2049 = vpack.c.b16 %v2028, %v2027
        %v2050 = vpack.c.b16 %v2030, %v2029
        %v2051 = vpack.c.b16 %v2032, %v2031
        %v2052 = vpack.c.b16 %v2034, %v2033
        %v2053 = vpack.c.b16 %v2036, %v2035
        %v2054 = vpack.c.b16 %v2038, %v2037
        %v2055 = vpack.c.b16 %v2040, %v2039
        %v2056 = vpack.c.b16 %v2042, %v2041
        %v2057 = vpack.c.b16 %v2044, %v2043
        %v2058 = vpack.c.b16 %v2046, %v2045
        %v2072 = vsel %vm321, %v1994, 0
        %v2075 = vsel %vm321, %v1996, 0
        %2077 = vmatprep.subr.bf16.mxu0 0
        %2078 = vmatpush1.bf16.msra.mxu0 %v2054
        %2079 = vmatprep.subr.bf16.mxu0 0
        %2080 = vmatpush1.bf16.msra.mxu0 %v2053
        %2081 = vmatprep.subr.bf16.mxu0 0
        %2082 = vmatpush1.bf16.msra.mxu0 %v2052
        %2083 = vmatprep.subr.bf16.mxu0 0
        %2084 = vmatpush1.bf16.msra.mxu0 %v2051
        %2085 = vmatprep.subr.bf16.mxu0 0
        %2086 = vmatpush1.bf16.msra.mxu0 %v2050
        %2087 = vmatprep.subr.bf16.mxu0 0
        %2088 = vmatpush1.bf16.msra.mxu0 %v2049
        %2089 = vmatprep.subr.bf16.mxu0 0
        %2090 = vmatpush1.bf16.msra.mxu0 %v2048
        %2091 = vmatprep.subr.bf16.mxu0 0
        %2092 = vmatpush1.bf16.msra.mxu0 %v2047
        %2093 = vmatprep.subr.bf16.mxu0 0
        %2094 = vmatpush2.bf16.msra.mxu0 0
        %2095 = vmatprep.subr.bf16.mxu0 0
        %2096 = vmatpush2.bf16.msra.mxu0 0
        %2097 = vmatprep.subr.bf16.mxu0 0
        %2098 = vmatpush2.bf16.msra.mxu0 0
        %2099 = vmatprep.subr.bf16.mxu0 0
        %2100 = vmatpush2.bf16.msra.mxu0 0
        %2101 = vmatprep.subr.bf16.mxu0 0
        %2102 = vmatpush2.bf16.msra.mxu0 %v2058
        %2103 = vmatprep.subr.bf16.mxu0 0
        %2104 = vmatpush2.bf16.msra.mxu0 %v2057
        %2105 = vmatprep.subr.bf16.mxu0 0
        %2106 = vmatpush2.bf16.msra.mxu0 %v2056
        %2107 = vmatprep.subr.bf16.mxu0 0
        %2108 = vmatpush2.bf16.msra.mxu0 %v2055
        %2109 = vmatprep.mubr.bf16.mxu0 %v2072
        %2110 = vmatmul.mubr.bf16.gmra.mxu0 %v1993
        %v2111 = vpop.f32.mrf.mxu0
        %v2112 = vadd.f32 %v1991, %v2111
        %v2113 = vpop.f32.mrf.mxu0
        %v2114 = vpop.f32.mrf.mxu0
        %v2115 = vadd.f32 %v1991, %v2114
        %v2116 = vpop.f32.mrf.mxu0
        %2117 = vmatprep.mubr.bf16.mxu0 %v2075
        %2118 = vmatmul.mubr.bf16.gmra.mxu0 %v1995
        %v2119 = vpop.f32.mrf.mxu0
        %v2120 = vadd.f32 %v1991, %v2119
        %v2121 = vpop.f32.mrf.mxu0
        %v2122 = vpop.f32.mrf.mxu0
        %v2123 = vadd.f32 %v1991, %v2122
        %v2124 = vpop.f32.mrf.mxu0
        %2125 = vdwg.mxu0
        %v2126 = vmax.f32 %v2112, 0.0
        %v2127 = vmax.f32 %v2115, 0.0
        %v2128 = vmax.f32 %v2120, 0.0
        %v2129 = vmax.f32 %v2123, 0.0
        %v2130 = vpack.c.bf16 %v2127, %v2126
        %v2131 = vpack.c.bf16 %v2129, %v2128
        %v2134 = vunpack.c.l.b16 %v2130
        %v2135 = vunpack.c.h.b16 %v2130
        %v2136 = vunpack.c.l.b16 %v2131
        %v2137 = vunpack.c.h.b16 %v2131
        %v2138 = vpack.c.b16 %v2134, %v2134
        %v2139 = vpack.c.b16 %v2135, %v2135
        %v2140 = vpack.c.b16 %v2136, %v2136
        %v2141 = vpack.c.b16 %v2137, %v2137
        %v2143 = vshrl.u32 %v2138, 16
        %v2145 = vrot.slane %v2143, 7
        %v2146 = vshll.u32 %v2138, 16
        %v2148 = vor.u32 %v2145, %v2146
        %v2150 = vshrl.u32 %v2139, 16
        %v2152 = vrot.slane %v2150, 7
        %v2153 = vshll.u32 %v2139, 16
        %v2155 = vor.u32 %v2152, %v2153
        %v2157 = vshrl.u32 %v2140, 16
        %v2159 = vrot.slane %v2157, 7
        %v2160 = vshll.u32 %v2140, 16
        %v2162 = vor.u32 %v2159, %v2160
        %v2164 = vshrl.u32 %v2141, 16
        %v2166 = vrot.slane %v2164, 7
        %v2167 = vshll.u32 %v2141, 16
        %v2169 = vor.u32 %v2166, %v2167
        %v2174 = vsel %vm289, 0, %v2148
        %v2175 = vsel %vm289, 0, %v2155
        %v2176 = vsel %vm289, 0, %v2162
        %v2177 = vsel %vm289, 0, %v2169
        %v2178 = vrot.slane %v2146, 1
        %v2179 = vor.u32 %v2143, %v2178
        %v2180 = vrot.slane %v2153, 1
        %v2181 = vor.u32 %v2150, %v2180
        %v2182 = vrot.slane %v2160, 1
        %v2183 = vor.u32 %v2157, %v2182
        %v2184 = vrot.slane %v2167, 1
        %v2185 = vor.u32 %v2164, %v2184
        %v2190 = vsel %vm1861, %v2179, 0
        %v2191 = vsel %vm1861, %v2181, 0
        %v2192 = vsel %vm1861, %v2183, 0
        %v2193 = vsel %vm1861, %v2185, 0
        %2194 = vrot.lane.b32.xlu0 %v2138, 64
        %v2195 = vpop.permute.xlu0 %2194
        %2196 = vrot.lane.b32.xlu0 %v2139, 64
        %v2197 = vpop.permute.xlu0 %2196
        %2198 = vrot.lane.b32.xlu0 %v2140, 64
        %v2199 = vpop.permute.xlu0 %2198
        %2200 = vrot.lane.b32.xlu0 %v2141, 64
        %v2201 = vpop.permute.xlu0 %2200
        %v2204 = vsel %vm321, %v2174, %v2195
        %v2207 = vsel %vm321, %v2175, %v2197
        %v2210 = vsel %vm321, %v2176, %v2199
        %v2213 = vsel %vm321, %v2177, %v2201
        %v2222 = vunpack.c.l.b16 %v2204
        %v2223 = vunpack.c.l.b16 %v2190
        %v2224 = vunpack.c.l.b16 %v2207
        %v2225 = vunpack.c.l.b16 %v2191
        %v2226 = vunpack.c.l.b16 %v2210
        %v2227 = vunpack.c.l.b16 %v2192
        %v2228 = vunpack.c.l.b16 %v2213
        %v2229 = vunpack.c.l.b16 %v2193
        %s2230 = scalar_lea.vmem %s3, 96
        %v2231 = vld [vmem:[%s2230] sm:$0xf]
        %v2232 = vld [vmem:[%s2230 + $0x4] sm:$0xf]
        %v2233 = vld [vmem:[%s2230 + $0x8] sm:$0xf]
        %v2234 = vld [vmem:[%s2230 + $0xc] sm:$0xf]
        %v2235 = vld [vmem:[%s2230 + $0x10] sm:$0xf]
        %v2236 = vld [vmem:[%s2230 + $0x14] sm:$0xf]
        %v2237 = vld [vmem:[%s2230 + $0x18] sm:$0xf]
        %v2238 = vld [vmem:[%s2230 + $0x1c] sm:$0xf]
        %v2239 = vld [vmem:[%s2230 + $0x20] sm:$0xf]
        %v2240 = vld [vmem:[%s2230 + $0x24] sm:$0xf]
        %v2241 = vld [vmem:[%s2230 + $0x28] sm:$0xf]
        %v2242 = vld [vmem:[%s2230 + $0x2c] sm:$0xf]
        %v2243 = vld [vmem:[%s2230 + $0x30] sm:$0xf]
        %v2244 = vld [vmem:[%s2230 + $0x34] sm:$0xf]
        %v2245 = vld [vmem:[%s2230 + $0x38] sm:$0xf]
        %v2246 = vld [vmem:[%s2230 + $0x3c] sm:$0xf]
        %v2247 = vld [vmem:[%s2230 + $0x40] sm:$0xf]
        %v2248 = vld [vmem:[%s2230 + $0x44] sm:$0xf]
        %v2249 = vld [vmem:[%s2230 + $0x48] sm:$0xf]
        %v2250 = vld [vmem:[%s2230 + $0x4c] sm:$0xf]
        %v2251 = vld [vmem:[%s2230 + $0x50] sm:$0xf]
        %v2252 = vld [vmem:[%s2230 + $0x54] sm:$0xf]
        %v2253 = vld [vmem:[%s2230 + $0x58] sm:$0xf]
        %v2254 = vld [vmem:[%s2230 + $0x5c] sm:$0xf]
        %s2255 = scalar_lea.vmem %s4, 1
        %v2256 = vld [vmem:[%s2255] sm:$0x1]
        %v2258 = vlaneseq
        %v2259 = vshrl.u32 %v2258, 7
        %v2260 = vsub.s32 0, %v2259
        %v2261 = vrot.slane %v2256, %v2260
        %v2263 = vpack.c.b16 %v2224, %v2222
        %v2264 = vpack.c.b16 %v2225, %v2223
        %v2265 = vpack.c.b16 %v2228, %v2226
        %v2266 = vpack.c.b16 %v2229, %v2227
        %v2293 = vunpack.c.l.b16 %v2231
        %v2294 = vunpack.c.l.b16 %v2232
        %v2295 = vunpack.c.l.b16 %v2233
        %v2296 = vunpack.c.l.b16 %v2234
        %v2297 = vunpack.c.l.b16 %v2235
        %v2298 = vunpack.c.l.b16 %v2236
        %v2299 = vunpack.c.l.b16 %v2237
        %v2300 = vunpack.c.l.b16 %v2238
        %v2301 = vunpack.c.l.b16 %v2239
        %v2302 = vunpack.c.l.b16 %v2240
        %v2303 = vunpack.c.l.b16 %v2241
        %v2304 = vunpack.c.l.b16 %v2242
        %v2305 = vunpack.c.l.b16 %v2243
        %v2306 = vunpack.c.l.b16 %v2244
        %v2307 = vunpack.c.l.b16 %v2245
        %v2308 = vunpack.c.l.b16 %v2246
        %v2309 = vunpack.c.l.b16 %v2247
        %v2310 = vunpack.c.l.b16 %v2248
        %v2311 = vunpack.c.l.b16 %v2249
        %v2312 = vunpack.c.l.b16 %v2250
        %v2313 = vunpack.c.l.b16 %v2251
        %v2314 = vunpack.c.l.b16 %v2252
        %v2315 = vunpack.c.l.b16 %v2253
        %v2316 = vunpack.c.l.b16 %v2254
        %v2317 = vpack.c.b16 %v2294, %v2293
        %v2318 = vpack.c.b16 %v2296, %v2295
        %v2319 = vpack.c.b16 %v2298, %v2297
        %v2320 = vpack.c.b16 %v2300, %v2299
        %v2321 = vpack.c.b16 %v2302, %v2301
        %v2322 = vpack.c.b16 %v2304, %v2303
        %v2323 = vpack.c.b16 %v2306, %v2305
        %v2324 = vpack.c.b16 %v2308, %v2307
        %v2325 = vpack.c.b16 %v2310, %v2309
        %v2326 = vpack.c.b16 %v2312, %v2311
        %v2327 = vpack.c.b16 %v2314, %v2313
        %v2328 = vpack.c.b16 %v2316, %v2315
        %v2342 = vsel %vm321, %v2264, 0
        %v2345 = vsel %vm321, %v2266, 0
        %2347 = vmatprep.subr.bf16.mxu0 0
        %2348 = vmatpush1.bf16.msra.mxu0 %v2324
        %2349 = vmatprep.subr.bf16.mxu0 0
        %2350 = vmatpush1.bf16.msra.mxu0 %v2323
        %2351 = vmatprep.subr.bf16.mxu0 0
        %2352 = vmatpush1.bf16.msra.mxu0 %v2322
        %2353 = vmatprep.subr.bf16.mxu0 0
        %2354 = vmatpush1.bf16.msra.mxu0 %v2321
        %2355 = vmatprep.subr.bf16.mxu0 0
        %2356 = vmatpush1.bf16.msra.mxu0 %v2320
        %2357 = vmatprep.subr.bf16.mxu0 0
        %2358 = vmatpush1.bf16.msra.mxu0 %v2319
        %2359 = vmatprep.subr.bf16.mxu0 0
        %2360 = vmatpush1.bf16.msra.mxu0 %v2318
        %2361 = vmatprep.subr.bf16.mxu0 0
        %2362 = vmatpush1.bf16.msra.mxu0 %v2317
        %2363 = vmatprep.subr.bf16.mxu0 0
        %2364 = vmatpush2.bf16.msra.mxu0 0
        %2365 = vmatprep.subr.bf16.mxu0 0
        %2366 = vmatpush2.bf16.msra.mxu0 0
        %2367 = vmatprep.subr.bf16.mxu0 0
        %2368 = vmatpush2.bf16.msra.mxu0 0
        %2369 = vmatprep.subr.bf16.mxu0 0
        %2370 = vmatpush2.bf16.msra.mxu0 0
        %2371 = vmatprep.subr.bf16.mxu0 0
        %2372 = vmatpush2.bf16.msra.mxu0 %v2328
        %2373 = vmatprep.subr.bf16.mxu0 0
        %2374 = vmatpush2.bf16.msra.mxu0 %v2327
        %2375 = vmatprep.subr.bf16.mxu0 0
        %2376 = vmatpush2.bf16.msra.mxu0 %v2326
        %2377 = vmatprep.subr.bf16.mxu0 0
        %2378 = vmatpush2.bf16.msra.mxu0 %v2325
        %2379 = vmatprep.mubr.bf16.mxu0 %v2342
        %2380 = vmatmul.mubr.bf16.gmra.mxu0 %v2263
        %v2381 = vpop.f32.mrf.mxu0
        %v2382 = vadd.f32 %v2261, %v2381
        %v2383 = vpop.f32.mrf.mxu0
        %v2384 = vpop.f32.mrf.mxu0
        %v2385 = vadd.f32 %v2261, %v2384
        %v2386 = vpop.f32.mrf.mxu0
        %2387 = vmatprep.mubr.bf16.mxu0 %v2345
        %2388 = vmatmul.mubr.bf16.gmra.mxu0 %v2265
        %v2389 = vpop.f32.mrf.mxu0
        %v2390 = vadd.f32 %v2261, %v2389
        %v2391 = vpop.f32.mrf.mxu0
        %v2392 = vpop.f32.mrf.mxu0
        %v2393 = vadd.f32 %v2261, %v2392
        %v2394 = vpop.f32.mrf.mxu0
        %2395 = vdwg.mxu0
        %v2428 = vlaneseq
        %v2429 = vshrl.u32 %v2428, 7
        %v2430 = vsub.s32 0, %v2429
        %v2431 = vrot.slane %v1579, %v2430
        %v2432 = vlaneseq
        %v2433 = vshrl.u32 %v2432, 7
        %v2434 = vsub.s32 0, %v2433
        %v2435 = vrot.slane %v1580, %v2434
        %v2436 = vlaneseq
        %v2437 = vshrl.u32 %v2436, 7
        %v2438 = vsub.s32 0, %v2437
        %v2439 = vrot.slane %v1581, %v2438
        %v2440 = vlaneseq
        %v2441 = vshrl.u32 %v2440, 7
        %v2442 = vsub.s32 0, %v2441
        %v2443 = vrot.slane %v1582, %v2442
        %v2444 = vlaneseq
        %v2445 = vshrl.u32 %v2444, 7
        %v2446 = vsub.s32 0, %v2445
        %v2447 = vrot.slane %v1583, %v2446
        %v2448 = vlaneseq
        %v2449 = vshrl.u32 %v2448, 7
        %v2450 = vsub.s32 0, %v2449
        %v2451 = vrot.slane %v1584, %v2450
        %v2452 = vlaneseq
        %v2453 = vshrl.u32 %v2452, 7
        %v2454 = vsub.s32 0, %v2453
        %v2455 = vrot.slane %v1585, %v2454
        %v2456 = vlaneseq
        %v2457 = vshrl.u32 %v2456, 7
        %v2458 = vsub.s32 0, %v2457
        %v2459 = vrot.slane %v1586, %v2458
        %v2460 = vlaneseq
        %v2461 = vshrl.u32 %v2460, 7
        %v2462 = vsub.s32 0, %v2461
        %v2463 = vrot.slane %v1587, %v2462
        %v2464 = vlaneseq
        %v2465 = vshrl.u32 %v2464, 7
        %v2466 = vsub.s32 0, %v2465
        %v2467 = vrot.slane %v1588, %v2466
        %v2468 = vlaneseq
        %v2469 = vshrl.u32 %v2468, 7
        %v2470 = vsub.s32 0, %v2469
        %v2471 = vrot.slane %v1589, %v2470
        %v2472 = vlaneseq
        %v2473 = vshrl.u32 %v2472, 7
        %v2474 = vsub.s32 0, %v2473
        %v2475 = vrot.slane %v1590, %v2474
        %v2476 = vlaneseq
        %v2477 = vshrl.u32 %v2476, 7
        %v2478 = vsub.s32 0, %v2477
        %v2479 = vrot.slane %v1591, %v2478
        %v2480 = vlaneseq
        %v2481 = vshrl.u32 %v2480, 7
        %v2482 = vsub.s32 0, %v2481
        %v2483 = vrot.slane %v1592, %v2482
        %v2484 = vlaneseq
        %v2485 = vshrl.u32 %v2484, 7
        %v2486 = vsub.s32 0, %v2485
        %v2487 = vrot.slane %v1593, %v2486
        %v2488 = vlaneseq
        %v2489 = vshrl.u32 %v2488, 7
        %v2490 = vsub.s32 0, %v2489
        %v2491 = vrot.slane %v1594, %v2490
        %v2492 = vlaneseq
        %v2493 = vshrl.u32 %v2492, 7
        %v2494 = vsub.s32 0, %v2493
        %v2495 = vrot.slane %v1595, %v2494
        %v2496 = vlaneseq
        %v2497 = vshrl.u32 %v2496, 7
        %v2498 = vsub.s32 0, %v2497
        %v2499 = vrot.slane %v1596, %v2498
        %v2500 = vlaneseq
        %v2501 = vshrl.u32 %v2500, 7
        %v2502 = vsub.s32 0, %v2501
        %v2503 = vrot.slane %v1597, %v2502
        %v2504 = vlaneseq
        %v2505 = vshrl.u32 %v2504, 7
        %v2506 = vsub.s32 0, %v2505
        %v2507 = vrot.slane %v1598, %v2506
        %v2508 = vlaneseq
        %v2509 = vshrl.u32 %v2508, 7
        %v2510 = vsub.s32 0, %v2509
        %v2511 = vrot.slane %v1599, %v2510
        %v2512 = vlaneseq
        %v2513 = vshrl.u32 %v2512, 7
        %v2514 = vsub.s32 0, %v2513
        %v2515 = vrot.slane %v1600, %v2514
        %v2516 = vlaneseq
        %v2517 = vshrl.u32 %v2516, 7
        %v2518 = vsub.s32 0, %v2517
        %v2519 = vrot.slane %v1601, %v2518
        %v2520 = vlaneseq
        %v2521 = vshrl.u32 %v2520, 7
        %v2522 = vsub.s32 0, %v2521
        %v2523 = vrot.slane %v1602, %v2522
        %v2524 = vlaneseq
        %v2525 = vshrl.u32 %v2524, 7
        %v2526 = vsub.s32 0, %v2525
        %v2527 = vrot.slane %v1603, %v2526
        %v2528 = vlaneseq
        %v2529 = vshrl.u32 %v2528, 7
        %v2530 = vsub.s32 0, %v2529
        %v2531 = vrot.slane %v1604, %v2530
        %v2532 = vlaneseq
        %v2533 = vshrl.u32 %v2532, 7
        %v2534 = vsub.s32 0, %v2533
        %v2535 = vrot.slane %v1605, %v2534
        %v2536 = vlaneseq
        %v2537 = vshrl.u32 %v2536, 7
        %v2538 = vsub.s32 0, %v2537
        %v2539 = vrot.slane %v1606, %v2538
        %v2540 = vlaneseq
        %v2541 = vshrl.u32 %v2540, 7
        %v2542 = vsub.s32 0, %v2541
        %v2543 = vrot.slane %v1607, %v2542
        %v2544 = vlaneseq
        %v2545 = vshrl.u32 %v2544, 7
        %v2546 = vsub.s32 0, %v2545
        %v2547 = vrot.slane %v1608, %v2546
        %v2548 = vlaneseq
        %v2549 = vshrl.u32 %v2548, 7
        %v2550 = vsub.s32 0, %v2549
        %v2551 = vrot.slane %v1609, %v2550
        %v2552 = vlaneseq
        %v2553 = vshrl.u32 %v2552, 7
        %v2554 = vsub.s32 0, %v2553
        %v2555 = vrot.slane %v1610, %v2554
        %v2556 = vsel %vm1285, %v2435, %v2431
        %v2557 = vsel %vm806, %v2439, %v2556
        %v2558 = vsel %vm808, %v2443, %v2557
        %v2559 = vsel %vm810, %v2447, %v2558
        %v2560 = vsel %vm812, %v2451, %v2559
        %v2561 = vsel %vm814, %v2455, %v2560
        %v2562 = vsel %vm816, %v2459, %v2561
        %v2563 = vsel %vm1285, %v2467, %v2463
        %v2564 = vsel %vm806, %v2471, %v2563
        %v2565 = vsel %vm808, %v2475, %v2564
        %v2566 = vsel %vm810, %v2479, %v2565
        %v2567 = vsel %vm812, %v2483, %v2566
        %v2568 = vsel %vm814, %v2487, %v2567
        %v2569 = vsel %vm816, %v2491, %v2568
        %v2570 = vsel %vm1285, %v2499, %v2495
        %v2571 = vsel %vm806, %v2503, %v2570
        %v2572 = vsel %vm808, %v2507, %v2571
        %v2573 = vsel %vm810, %v2511, %v2572
        %v2574 = vsel %vm812, %v2515, %v2573
        %v2575 = vsel %vm814, %v2519, %v2574
        %v2576 = vsel %vm816, %v2523, %v2575
        %v2577 = vsel %vm1285, %v2531, %v2527
        %v2578 = vsel %vm806, %v2535, %v2577
        %v2579 = vsel %vm808, %v2539, %v2578
        %v2580 = vsel %vm810, %v2543, %v2579
        %v2581 = vsel %vm812, %v2547, %v2580
        %v2582 = vsel %vm814, %v2551, %v2581
        %v2583 = vsel %vm816, %v2555, %v2582
        %v2588 = vadd.f32 %v2382, %v2562
        %v2589 = vadd.f32 %v2385, %v2569
        %v2590 = vadd.f32 %v2390, %v2576
        %v2591 = vadd.f32 %v2393, %v2583
        %v2592 = vmax.f32 %v2588, 0.0
        %v2593 = vmax.f32 %v2589, 0.0
        %v2594 = vmax.f32 %v2590, 0.0
        %v2595 = vmax.f32 %v2591, 0.0
        %v2596 = vpack.c.bf16 %v2593, %v2592
        %v2597 = vpack.c.bf16 %v2595, %v2594
        %v2600 = vunpack.c.l.b16 %v2596
        %v2601 = vunpack.c.h.b16 %v2596
        %v2602 = vunpack.c.l.b16 %v2597
        %v2603 = vunpack.c.h.b16 %v2597
        %v2604 = vpack.c.b16 %v2600, %v2600
        %v2605 = vpack.c.b16 %v2601, %v2601
        %v2606 = vpack.c.b16 %v2602, %v2602
        %v2607 = vpack.c.b16 %v2603, %v2603
        %v2609 = vshrl.u32 %v2604, 16
        %v2611 = vrot.slane %v2609, 7
        %v2612 = vshll.u32 %v2604, 16
        %v2614 = vor.u32 %v2611, %v2612
        %v2616 = vshrl.u32 %v2605, 16
        %v2618 = vrot.slane %v2616, 7
        %v2619 = vshll.u32 %v2605, 16
        %v2621 = vor.u32 %v2618, %v2619
        %v2623 = vshrl.u32 %v2606, 16
        %v2625 = vrot.slane %v2623, 7
        %v2626 = vshll.u32 %v2606, 16
        %v2628 = vor.u32 %v2625, %v2626
        %v2630 = vshrl.u32 %v2607, 16
        %v2632 = vrot.slane %v2630, 7
        %v2633 = vshll.u32 %v2607, 16
        %v2635 = vor.u32 %v2632, %v2633
        %v2640 = vsel %vm289, 0, %v2614
        %v2641 = vsel %vm289, 0, %v2621
        %v2642 = vsel %vm289, 0, %v2628
        %v2643 = vsel %vm289, 0, %v2635
        %v2644 = vrot.slane %v2612, 1
        %v2645 = vor.u32 %v2609, %v2644
        %v2646 = vrot.slane %v2619, 1
        %v2647 = vor.u32 %v2616, %v2646
        %v2648 = vrot.slane %v2626, 1
        %v2649 = vor.u32 %v2623, %v2648
        %v2650 = vrot.slane %v2633, 1
        %v2651 = vor.u32 %v2630, %v2650
        %v2656 = vsel %vm1861, %v2645, 0
        %v2657 = vsel %vm1861, %v2647, 0
        %v2658 = vsel %vm1861, %v2649, 0
        %v2659 = vsel %vm1861, %v2651, 0
        %2660 = vrot.lane.b32.xlu0 %v2604, 64
        %v2661 = vpop.permute.xlu0 %2660
        %2662 = vrot.lane.b32.xlu0 %v2605, 64
        %v2663 = vpop.permute.xlu0 %2662
        %2664 = vrot.lane.b32.xlu0 %v2606, 64
        %v2665 = vpop.permute.xlu0 %2664
        %2666 = vrot.lane.b32.xlu0 %v2607, 64
        %v2667 = vpop.permute.xlu0 %2666
        %v2670 = vsel %vm321, %v2640, %v2661
        %v2673 = vsel %vm321, %v2641, %v2663
        %v2676 = vsel %vm321, %v2642, %v2665
        %v2679 = vsel %vm321, %v2643, %v2667
        %v2688 = vunpack.c.l.b16 %v2670
        %v2689 = vunpack.c.l.b16 %v2656
        %v2690 = vunpack.c.l.b16 %v2673
        %v2691 = vunpack.c.l.b16 %v2657
        %v2692 = vunpack.c.l.b16 %v2676
        %v2693 = vunpack.c.l.b16 %v2658
        %v2694 = vunpack.c.l.b16 %v2679
        %v2695 = vunpack.c.l.b16 %v2659
        %s2696 = scalar_lea.vmem %s3, 192
        %v2697 = vld [vmem:[%s2696] sm:$0xf]
        %v2698 = vld [vmem:[%s2696 + $0x4] sm:$0xf]
        %v2699 = vld [vmem:[%s2696 + $0x8] sm:$0xf]
        %v2700 = vld [vmem:[%s2696 + $0xc] sm:$0xf]
        %v2701 = vld [vmem:[%s2696 + $0x10] sm:$0xf]
        %v2702 = vld [vmem:[%s2696 + $0x14] sm:$0xf]
        %v2703 = vld [vmem:[%s2696 + $0x18] sm:$0xf]
        %v2704 = vld [vmem:[%s2696 + $0x1c] sm:$0xf]
        %v2705 = vld [vmem:[%s2696 + $0x20] sm:$0xf]
        %v2706 = vld [vmem:[%s2696 + $0x24] sm:$0xf]
        %v2707 = vld [vmem:[%s2696 + $0x28] sm:$0xf]
        %v2708 = vld [vmem:[%s2696 + $0x2c] sm:$0xf]
        %v2709 = vld [vmem:[%s2696 + $0x30] sm:$0xf]
        %v2710 = vld [vmem:[%s2696 + $0x34] sm:$0xf]
        %v2711 = vld [vmem:[%s2696 + $0x38] sm:$0xf]
        %v2712 = vld [vmem:[%s2696 + $0x3c] sm:$0xf]
        %v2713 = vld [vmem:[%s2696 + $0x40] sm:$0xf]
        %v2714 = vld [vmem:[%s2696 + $0x44] sm:$0xf]
        %v2715 = vld [vmem:[%s2696 + $0x48] sm:$0xf]
        %v2716 = vld [vmem:[%s2696 + $0x4c] sm:$0xf]
        %v2717 = vld [vmem:[%s2696 + $0x50] sm:$0xf]
        %v2718 = vld [vmem:[%s2696 + $0x54] sm:$0xf]
        %v2719 = vld [vmem:[%s2696 + $0x58] sm:$0xf]
        %v2720 = vld [vmem:[%s2696 + $0x5c] sm:$0xf]
        %s2721 = scalar_lea.vmem %s4, 2
        %v2722 = vld [vmem:[%s2721] sm:$0x1]
        %v2724 = vlaneseq
        %v2725 = vshrl.u32 %v2724, 7
        %v2726 = vsub.s32 0, %v2725
        %v2727 = vrot.slane %v2722, %v2726
        %v2729 = vpack.c.b16 %v2690, %v2688
        %v2730 = vpack.c.b16 %v2691, %v2689
        %v2731 = vpack.c.b16 %v2694, %v2692
        %v2732 = vpack.c.b16 %v2695, %v2693
        %v2759 = vunpack.c.l.b16 %v2697
        %v2760 = vunpack.c.l.b16 %v2698
        %v2761 = vunpack.c.l.b16 %v2699
        %v2762 = vunpack.c.l.b16 %v2700
        %v2763 = vunpack.c.l.b16 %v2701
        %v2764 = vunpack.c.l.b16 %v2702
        %v2765 = vunpack.c.l.b16 %v2703
        %v2766 = vunpack.c.l.b16 %v2704
        %v2767 = vunpack.c.l.b16 %v2705
        %v2768 = vunpack.c.l.b16 %v2706
        %v2769 = vunpack.c.l.b16 %v2707
        %v2770 = vunpack.c.l.b16 %v2708
        %v2771 = vunpack.c.l.b16 %v2709
        %v2772 = vunpack.c.l.b16 %v2710
        %v2773 = vunpack.c.l.b16 %v2711
        %v2774 = vunpack.c.l.b16 %v2712
        %v2775 = vunpack.c.l.b16 %v2713
        %v2776 = vunpack.c.l.b16 %v2714
        %v2777 = vunpack.c.l.b16 %v2715
        %v2778 = vunpack.c.l.b16 %v2716
        %v2779 = vunpack.c.l.b16 %v2717
        %v2780 = vunpack.c.l.b16 %v2718
        %v2781 = vunpack.c.l.b16 %v2719
        %v2782 = vunpack.c.l.b16 %v2720
        %v2783 = vpack.c.b16 %v2760, %v2759
        %v2784 = vpack.c.b16 %v2762, %v2761
        %v2785 = vpack.c.b16 %v2764, %v2763
        %v2786 = vpack.c.b16 %v2766, %v2765
        %v2787 = vpack.c.b16 %v2768, %v2767
        %v2788 = vpack.c.b16 %v2770, %v2769
        %v2789 = vpack.c.b16 %v2772, %v2771
        %v2790 = vpack.c.b16 %v2774, %v2773
        %v2791 = vpack.c.b16 %v2776, %v2775
        %v2792 = vpack.c.b16 %v2778, %v2777
        %v2793 = vpack.c.b16 %v2780, %v2779
        %v2794 = vpack.c.b16 %v2782, %v2781
        %v2808 = vsel %vm321, %v2730, 0
        %v2811 = vsel %vm321, %v2732, 0
        %2813 = vmatprep.subr.bf16.mxu0 0
        %2814 = vmatpush1.bf16.msra.mxu0 %v2790
        %2815 = vmatprep.subr.bf16.mxu0 0
        %2816 = vmatpush1.bf16.msra.mxu0 %v2789
        %2817 = vmatprep.subr.bf16.mxu0 0
        %2818 = vmatpush1.bf16.msra.mxu0 %v2788
        %2819 = vmatprep.subr.bf16.mxu0 0
        %2820 = vmatpush1.bf16.msra.mxu0 %v2787
        %2821 = vmatprep.subr.bf16.mxu0 0
        %2822 = vmatpush1.bf16.msra.mxu0 %v2786
        %2823 = vmatprep.subr.bf16.mxu0 0
        %2824 = vmatpush1.bf16.msra.mxu0 %v2785
        %2825 = vmatprep.subr.bf16.mxu0 0
        %2826 = vmatpush1.bf16.msra.mxu0 %v2784
        %2827 = vmatprep.subr.bf16.mxu0 0
        %2828 = vmatpush1.bf16.msra.mxu0 %v2783
        %2829 = vmatprep.subr.bf16.mxu0 0
        %2830 = vmatpush2.bf16.msra.mxu0 0
        %2831 = vmatprep.subr.bf16.mxu0 0
        %2832 = vmatpush2.bf16.msra.mxu0 0
        %2833 = vmatprep.subr.bf16.mxu0 0
        %2834 = vmatpush2.bf16.msra.mxu0 0
        %2835 = vmatprep.subr.bf16.mxu0 0
        %2836 = vmatpush2.bf16.msra.mxu0 0
        %2837 = vmatprep.subr.bf16.mxu0 0
        %2838 = vmatpush2.bf16.msra.mxu0 %v2794
        %2839 = vmatprep.subr.bf16.mxu0 0
        %2840 = vmatpush2.bf16.msra.mxu0 %v2793
        %2841 = vmatprep.subr.bf16.mxu0 0
        %2842 = vmatpush2.bf16.msra.mxu0 %v2792
        %2843 = vmatprep.subr.bf16.mxu0 0
        %2844 = vmatpush2.bf16.msra.mxu0 %v2791
        %2845 = vmatprep.mubr.bf16.mxu0 %v2808
        %2846 = vmatmul.mubr.bf16.gmra.mxu0 %v2729
        %v2847 = vpop.f32.mrf.mxu0
        %v2848 = vadd.f32 %v2727, %v2847
        %v2849 = vpop.f32.mrf.mxu0
        %v2850 = vpop.f32.mrf.mxu0
        %v2851 = vadd.f32 %v2727, %v2850
        %v2852 = vpop.f32.mrf.mxu0
        %2853 = vmatprep.mubr.bf16.mxu0 %v2811
        %2854 = vmatmul.mubr.bf16.gmra.mxu0 %v2731
        %v2855 = vpop.f32.mrf.mxu0
        %v2856 = vadd.f32 %v2727, %v2855
        %v2857 = vpop.f32.mrf.mxu0
        %v2858 = vpop.f32.mrf.mxu0
        %v2859 = vadd.f32 %v2727, %v2858
        %v2860 = vpop.f32.mrf.mxu0
        %2861 = vdwg.mxu0
        %v2862 = vmax.f32 %v2848, 0.0
        %v2863 = vmax.f32 %v2851, 0.0
        %v2864 = vmax.f32 %v2856, 0.0
        %v2865 = vmax.f32 %v2859, 0.0
        %v2866 = vpack.c.bf16 %v2863, %v2862
        %v2867 = vpack.c.bf16 %v2865, %v2864
        %v2870 = vunpack.c.l.b16 %v2866
        %v2871 = vunpack.c.h.b16 %v2866
        %v2872 = vunpack.c.l.b16 %v2867
        %v2873 = vunpack.c.h.b16 %v2867
        %v2874 = vpack.c.b16 %v2870, %v2870
        %v2875 = vpack.c.b16 %v2871, %v2871
        %v2876 = vpack.c.b16 %v2872, %v2872
        %v2877 = vpack.c.b16 %v2873, %v2873
        %v2879 = vshrl.u32 %v2874, 16
        %v2881 = vrot.slane %v2879, 7
        %v2882 = vshll.u32 %v2874, 16
        %v2884 = vor.u32 %v2881, %v2882
        %v2886 = vshrl.u32 %v2875, 16
        %v2888 = vrot.slane %v2886, 7
        %v2889 = vshll.u32 %v2875, 16
        %v2891 = vor.u32 %v2888, %v2889
        %v2893 = vshrl.u32 %v2876, 16
        %v2895 = vrot.slane %v2893, 7
        %v2896 = vshll.u32 %v2876, 16
        %v2898 = vor.u32 %v2895, %v2896
        %v2900 = vshrl.u32 %v2877, 16
        %v2902 = vrot.slane %v2900, 7
        %v2903 = vshll.u32 %v2877, 16
        %v2905 = vor.u32 %v2902, %v2903
        %v2910 = vsel %vm289, 0, %v2884
        %v2911 = vsel %vm289, 0, %v2891
        %v2912 = vsel %vm289, 0, %v2898
        %v2913 = vsel %vm289, 0, %v2905
        %v2914 = vrot.slane %v2882, 1
        %v2915 = vor.u32 %v2879, %v2914
        %v2916 = vrot.slane %v2889, 1
        %v2917 = vor.u32 %v2886, %v2916
        %v2918 = vrot.slane %v2896, 1
        %v2919 = vor.u32 %v2893, %v2918
        %v2920 = vrot.slane %v2903, 1
        %v2921 = vor.u32 %v2900, %v2920
        %v2926 = vsel %vm1861, %v2915, 0
        %v2927 = vsel %vm1861, %v2917, 0
        %v2928 = vsel %vm1861, %v2919, 0
        %v2929 = vsel %vm1861, %v2921, 0
        %2930 = vrot.lane.b32.xlu0 %v2874, 64
        %v2931 = vpop.permute.xlu0 %2930
        %2932 = vrot.lane.b32.xlu0 %v2875, 64
        %v2933 = vpop.permute.xlu0 %2932
        %2934 = vrot.lane.b32.xlu0 %v2876, 64
        %v2935 = vpop.permute.xlu0 %2934
        %2936 = vrot.lane.b32.xlu0 %v2877, 64
        %v2937 = vpop.permute.xlu0 %2936
        %v2940 = vsel %vm321, %v2910, %v2931
        %v2943 = vsel %vm321, %v2911, %v2933
        %v2946 = vsel %vm321, %v2912, %v2935
        %v2949 = vsel %vm321, %v2913, %v2937
        %v2958 = vunpack.c.l.b16 %v2940
        %v2959 = vunpack.c.l.b16 %v2926
        %v2960 = vunpack.c.l.b16 %v2943
        %v2961 = vunpack.c.l.b16 %v2927
        %v2962 = vunpack.c.l.b16 %v2946
        %v2963 = vunpack.c.l.b16 %v2928
        %v2964 = vunpack.c.l.b16 %v2949
        %v2965 = vunpack.c.l.b16 %v2929
        %s2966 = scalar_lea.vmem %s3, 288
        %v2967 = vld [vmem:[%s2966] sm:$0xf]
        %v2968 = vld [vmem:[%s2966 + $0x4] sm:$0xf]
        %v2969 = vld [vmem:[%s2966 + $0x8] sm:$0xf]
        %v2970 = vld [vmem:[%s2966 + $0xc] sm:$0xf]
        %v2971 = vld [vmem:[%s2966 + $0x10] sm:$0xf]
        %v2972 = vld [vmem:[%s2966 + $0x14] sm:$0xf]
        %v2973 = vld [vmem:[%s2966 + $0x18] sm:$0xf]
        %v2974 = vld [vmem:[%s2966 + $0x1c] sm:$0xf]
        %v2975 = vld [vmem:[%s2966 + $0x20] sm:$0xf]
        %v2976 = vld [vmem:[%s2966 + $0x24] sm:$0xf]
        %v2977 = vld [vmem:[%s2966 + $0x28] sm:$0xf]
        %v2978 = vld [vmem:[%s2966 + $0x2c] sm:$0xf]
        %v2979 = vld [vmem:[%s2966 + $0x30] sm:$0xf]
        %v2980 = vld [vmem:[%s2966 + $0x34] sm:$0xf]
        %v2981 = vld [vmem:[%s2966 + $0x38] sm:$0xf]
        %v2982 = vld [vmem:[%s2966 + $0x3c] sm:$0xf]
        %v2983 = vld [vmem:[%s2966 + $0x40] sm:$0xf]
        %v2984 = vld [vmem:[%s2966 + $0x44] sm:$0xf]
        %v2985 = vld [vmem:[%s2966 + $0x48] sm:$0xf]
        %v2986 = vld [vmem:[%s2966 + $0x4c] sm:$0xf]
        %v2987 = vld [vmem:[%s2966 + $0x50] sm:$0xf]
        %v2988 = vld [vmem:[%s2966 + $0x54] sm:$0xf]
        %v2989 = vld [vmem:[%s2966 + $0x58] sm:$0xf]
        %v2990 = vld [vmem:[%s2966 + $0x5c] sm:$0xf]
        %s2991 = scalar_lea.vmem %s4, 3
        %v2992 = vld [vmem:[%s2991] sm:$0x1]
        %v2994 = vlaneseq
        %v2995 = vshrl.u32 %v2994, 7
        %v2996 = vsub.s32 0, %v2995
        %v2997 = vrot.slane %v2992, %v2996
        %v2999 = vpack.c.b16 %v2960, %v2958
        %v3000 = vpack.c.b16 %v2961, %v2959
        %v3001 = vpack.c.b16 %v2964, %v2962
        %v3002 = vpack.c.b16 %v2965, %v2963
        %v3029 = vunpack.c.l.b16 %v2967
        %v3030 = vunpack.c.l.b16 %v2968
        %v3031 = vunpack.c.l.b16 %v2969
        %v3032 = vunpack.c.l.b16 %v2970
        %v3033 = vunpack.c.l.b16 %v2971
        %v3034 = vunpack.c.l.b16 %v2972
        %v3035 = vunpack.c.l.b16 %v2973
        %v3036 = vunpack.c.l.b16 %v2974
        %v3037 = vunpack.c.l.b16 %v2975
        %v3038 = vunpack.c.l.b16 %v2976
        %v3039 = vunpack.c.l.b16 %v2977
        %v3040 = vunpack.c.l.b16 %v2978
        %v3041 = vunpack.c.l.b16 %v2979
        %v3042 = vunpack.c.l.b16 %v2980
        %v3043 = vunpack.c.l.b16 %v2981
        %v3044 = vunpack.c.l.b16 %v2982
        %v3045 = vunpack.c.l.b16 %v2983
        %v3046 = vunpack.c.l.b16 %v2984
        %v3047 = vunpack.c.l.b16 %v2985
        %v3048 = vunpack.c.l.b16 %v2986
        %v3049 = vunpack.c.l.b16 %v2987
        %v3050 = vunpack.c.l.b16 %v2988
        %v3051 = vunpack.c.l.b16 %v2989
        %v3052 = vunpack.c.l.b16 %v2990
        %v3053 = vpack.c.b16 %v3030, %v3029
        %v3054 = vpack.c.b16 %v3032, %v3031
        %v3055 = vpack.c.b16 %v3034, %v3033
        %v3056 = vpack.c.b16 %v3036, %v3035
        %v3057 = vpack.c.b16 %v3038, %v3037
        %v3058 = vpack.c.b16 %v3040, %v3039
        %v3059 = vpack.c.b16 %v3042, %v3041
        %v3060 = vpack.c.b16 %v3044, %v3043
        %v3061 = vpack.c.b16 %v3046, %v3045
        %v3062 = vpack.c.b16 %v3048, %v3047
        %v3063 = vpack.c.b16 %v3050, %v3049
        %v3064 = vpack.c.b16 %v3052, %v3051
        %v3078 = vsel %vm321, %v3000, 0
        %v3081 = vsel %vm321, %v3002, 0
        %3083 = vmatprep.subr.bf16.mxu0 0
        %3084 = vmatpush1.bf16.msra.mxu0 %v3060
        %3085 = vmatprep.subr.bf16.mxu0 0
        %3086 = vmatpush1.bf16.msra.mxu0 %v3059
        %3087 = vmatprep.subr.bf16.mxu0 0
        %3088 = vmatpush1.bf16.msra.mxu0 %v3058
        %3089 = vmatprep.subr.bf16.mxu0 0
        %3090 = vmatpush1.bf16.msra.mxu0 %v3057
        %3091 = vmatprep.subr.bf16.mxu0 0
        %3092 = vmatpush1.bf16.msra.mxu0 %v3056
        %3093 = vmatprep.subr.bf16.mxu0 0
        %3094 = vmatpush1.bf16.msra.mxu0 %v3055
        %3095 = vmatprep.subr.bf16.mxu0 0
        %3096 = vmatpush1.bf16.msra.mxu0 %v3054
        %3097 = vmatprep.subr.bf16.mxu0 0
        %3098 = vmatpush1.bf16.msra.mxu0 %v3053
        %3099 = vmatprep.subr.bf16.mxu0 0
        %3100 = vmatpush2.bf16.msra.mxu0 0
        %3101 = vmatprep.subr.bf16.mxu0 0
        %3102 = vmatpush2.bf16.msra.mxu0 0
        %3103 = vmatprep.subr.bf16.mxu0 0
        %3104 = vmatpush2.bf16.msra.mxu0 0
        %3105 = vmatprep.subr.bf16.mxu0 0
        %3106 = vmatpush2.bf16.msra.mxu0 0
        %3107 = vmatprep.subr.bf16.mxu0 0
        %3108 = vmatpush2.bf16.msra.mxu0 %v3064
        %3109 = vmatprep.subr.bf16.mxu0 0
        %3110 = vmatpush2.bf16.msra.mxu0 %v3063
        %3111 = vmatprep.subr.bf16.mxu0 0
        %3112 = vmatpush2.bf16.msra.mxu0 %v3062
        %3113 = vmatprep.subr.bf16.mxu0 0
        %3114 = vmatpush2.bf16.msra.mxu0 %v3061
        %3115 = vmatprep.mubr.bf16.mxu0 %v3078
        %3116 = vmatmul.mubr.bf16.gmra.mxu0 %v2999
        %v3117 = vpop.f32.mrf.mxu0
        %v3118 = vadd.f32 %v2997, %v3117
        %v3119 = vpop.f32.mrf.mxu0
        %v3120 = vpop.f32.mrf.mxu0
        %v3121 = vadd.f32 %v2997, %v3120
        %v3122 = vpop.f32.mrf.mxu0
        %3123 = vmatprep.mubr.bf16.mxu0 %v3081
        %3124 = vmatmul.mubr.bf16.gmra.mxu0 %v3001
        %v3125 = vpop.f32.mrf.mxu0
        %v3126 = vadd.f32 %v2997, %v3125
        %v3127 = vpop.f32.mrf.mxu0
        %v3128 = vpop.f32.mrf.mxu0
        %v3129 = vadd.f32 %v2997, %v3128
        %v3130 = vpop.f32.mrf.mxu0
        %3131 = vdwg.mxu0
        %v3132 = vadd.f32 %v3118, %v2588
        %v3133 = vadd.f32 %v3121, %v2589
        %v3134 = vadd.f32 %v3126, %v2590
        %v3135 = vadd.f32 %v3129, %v2591
        %3138 = vrot.lane.b32.xlu0 %v3133, 64
        %v3139 = vpop.permute.xlu0 %3138
        %3140 = vrot.lane.b32.xlu0 %v3135, 64
        %v3141 = vpop.permute.xlu0 %3140
        %v3144 = vsel %vm321, %v3132, %v3139
        %v3145 = vsel %vm321, %v3134, %v3141
        %3146 = vst [vmem:[%s218] sm:$0xff] %v3144
        %3147 = vst [vmem:[%s218 + $0x8] sm:$0xff] %v3145
        %s3148 = sand.u32 %s137, 1
        %s3149 = scalar_lea.sflag [#allocation3], %s3148
        %s3150 = sand.u32 %s137, 1
        %s3151 = smul.addr %s3150, 16
        %s3152 = scalar_lea.vmem [#allocation2], %s3151
        // Predicated region
        $region41: #{tpu_custom_call.1} parent=39 // pred_check
          %p3153 = pneg %p147
        $region42: #{tpu_custom_call.1} parent=39 // pred_check_branch
          %3155 = sbr.rel (%p3153) target = $region44
        $region43: #{tpu_custom_call.1} parent=39 // pred_region
          %s3156 = smul.u32 2, %s19
          %s3158 = ssub.s32 256, 256
          %3159 = vsyncadd %s3149, %s3158
          %s3160 = smul.addr %s3156, 128
          %s3161 = scalar_lea.hbm %s5, %s3160
          %s3162 = sshll.u32 %s3152, 4
          %s3163 = int_to_ptr.vmem [resolvable:$true] %s3162
          %3168 = dma.vmem_to_hbm [thread:$0]  %s3163, 256, %s3161, %s3149, 128, 128, 8
        $region44: #{tpu_custom_call.1} parent=39 // pred_fallthru
          _
      $region40: #{tpu_custom_call.1} parent=5 // pred_fallthru
        _
      %p3169 = scmp.le.s32.totalorder 2, %s14
      // Predicated region
      $region45: #{tpu_custom_call.1} parent=5 // pred_check
        %p3170 = pneg %p3169
      $region46: #{tpu_custom_call.1} parent=5 // pred_check_branch
        %3172 = sbr.rel (%p3170) target = $region48
      $region47: #{tpu_custom_call.1} parent=5 // pred_region
        %s3173 = ssub.s32 %s14, 2
        // Predicated region
        $region49: #{tpu_custom_call.1} parent=47 // pred_check
          %p3174 = pneg %p153
        $region50: #{tpu_custom_call.1} parent=47 // pred_check_branch
          %3176 = sbr.rel (%p3174) target = $region52
        $region51: #{tpu_custom_call.1} parent=47 // pred_region
          %s3177 = sand.u32 %s138, 1
          %s3178 = scalar_lea.sflag [#allocation3], %s3177
          %s3179 = sand.u32 %s138, 1
          %s3180 = smul.addr %s3179, 16
          %s3181 = scalar_lea.vmem [#allocation2], %s3180
          %3182 = dma.done %s3178, 256
        $region52: #{tpu_custom_call.1} parent=47 // pred_fallthru
          _
      $region48: #{tpu_custom_call.1} parent=5 // pred_fallthru
        _
    $region6: #{tpu_custom_call.1} parent=1 // loop_footer
      %s18 = sadd.s32 1, %s14
    $region7: #{tpu_custom_call.1} parent=1 // loop_footer_branch
      %13 = sbr.rel target = $region3
    $region8: #{tpu_custom_call.1} parent=1 // loop_exit
      _
    %3183 = vsyncpa [#allocation3], 1
    %s3184 = scalar_lea.sflag [#allocation3], 1
    %3185 = vsyncpa %s3184, 1

</llo_original>
